<compile_context>
chip_gen: v7x
topology: tpu7x:2x2x1
jax: 0.10.0
libtpu: 0.0.40
codegen_flags: <defaults>
</compile_context>

<pallas_src>
import jax
import jax.numpy as jnp
from jax.experimental import pallas as pl
from jax.experimental.pallas import tpu as pltpu


H_PAD = 128                      # lane-aligned per-gate block width
GATE_ORDER = (0, 1, 3, 2)        # PyTorch (i, f, g, o) -> packed (i, f, o, g)


def lstm_kernel(x_ref, wih_ref, whh_ref, b_ref, wlin_ref, blin_ref, out_ref):
    L = x_ref.shape[0]              # static sequence length
    Hp = whh_ref.shape[0]           # padded hidden size (lane multiple)

    # ---- Hoisted input projection + bias: one (L, 4*Hp) buffer, outside the loop ----
    if x_ref.shape[1] == 1:
        # input_size == 1: pure VPU broadcast-multiply, no MXU needed.
        xproj = x_ref[...] * wih_ref[...] + b_ref[...]                   # (L, 4*Hp)
    else:
        xproj = (jnp.dot(x_ref[...], wih_ref[...],
                         preferred_element_type=jnp.float32)
                 + b_ref[...])                                           # (L, 4*Hp)

    # ---- Fully-unrolled serial recurrence; one fused MXU matmul per step ----
    # Padded-lane invariant: h/c init to 0 and W_hh pad rows/cols are exactly 0, so
    # pad lanes of c stay 0 (0.5 * tanh(0) = 0) and h stays 0 for all t.
    h = jnp.zeros((1, Hp), jnp.float32)
    c = jnp.zeros((1, Hp), jnp.float32)
    for t in range(L):                                                   # L is static
        gates = xproj[t:t + 1, :] + jnp.dot(
            h, whh_ref[...], preferred_element_type=jnp.float32)         # (1, 4*Hp)
        # Packed gate order (i, f, o, g): one sigmoid over the first 3 gate blocks,
        # one tanh over the last block -> 2 EUP launches/step instead of 4.
        sig = jax.nn.sigmoid(gates[:, 0:3 * Hp])                         # (1, 3*Hp)
        g = jnp.tanh(gates[:, 3 * Hp:4 * Hp])                            # (1, Hp)
        i = sig[:, 0 * Hp:1 * Hp]
        f = sig[:, 1 * Hp:2 * Hp]
        o = sig[:, 2 * Hp:3 * Hp]
        c = f * c + i * g
        h = o * jnp.tanh(c)

    # ---- Final linear as VPU multiply + lane reduction (skip the MXU for a 1-wide out) ----
    # wlin_ref: (out_size, Hp), h: (1, Hp)  ->  (out_size, 1)
    out_ref[...] = (jnp.sum(wlin_ref[...] * h, axis=-1, keepdims=True)
                    + blin_ref[...])


def pack_params(params, h_pad=H_PAD):
    """Pad each gate block to h_pad lanes and concatenate (i, f, o, g) -> lane-aligned slabs.

    Call ONCE at init; the packed slabs are reused by every forward call.
    """
    w_ih, w_hh, b, w_lin, b_lin = params
    H = w_hh.shape[-1]
    pc = h_pad - H  # pad columns
    wih_cat = jnp.concatenate(
        [jnp.pad(w_ih[g], ((0, 0), (0, pc))) for g in GATE_ORDER], axis=-1)      # (in, 4*Hp)
    whh_cat = jnp.concatenate(
        [jnp.pad(w_hh[g], ((0, pc), (0, pc))) for g in GATE_ORDER], axis=-1)     # (Hp, 4*Hp)
    b_cat = jnp.concatenate(
        [jnp.pad(b[g], ((0, 0), (0, pc))) for g in GATE_ORDER], axis=-1)         # (1, 4*Hp)
    wlin_t = jnp.pad(w_lin.T, ((0, 0), (0, pc)))                                 # (out, Hp)
    blin_col = b_lin.T                                                           # (out, 1)
    return wih_cat, whh_cat, b_cat, wlin_t, blin_col


@jax.jit
def lstm_forward_packed(seq, wih_cat, whh_cat, b_cat, wlin_t, blin_col):
    """seq: (L,) or (L, input_size) float32; packed slabs from pack_params().

    Returns (out_size,) == PyTorch pred[-1]. Fully jitted: one device dispatch per call.
    """
    input_size = wih_cat.shape[0]
    out_size = wlin_t.shape[0]
    x = seq.reshape(-1, input_size).astype(jnp.float32)                 # (L, input_size)

    vmem = pl.BlockSpec(memory_space=pltpu.MemorySpace.VMEM)
    out = pl.pallas_call(
        lstm_kernel,
        out_shape=jax.ShapeDtypeStruct((out_size, 1), jnp.float32),
        in_specs=[vmem] * 6,
        out_specs=vmem,
    )(x, wih_cat, whh_cat, b_cat, wlin_t, blin_col)
    return out[:, 0]                                                     # (out_size,)


def init_params(key, input_size=1, hidden_size=50, out_size=1):
    """Deterministic init mimicking PyTorch's U(-1/sqrt(H), 1/sqrt(H))."""
    H = hidden_size
    bound = 1.0 / jnp.sqrt(jnp.float32(H))
    ks = jax.random.split(key, 6)
    # gate order matches PyTorch: i, f, g, o
    w_ih = jax.random.uniform(ks[0], (4, input_size, H), jnp.float32, -bound, bound)
    w_hh = jax.random.uniform(ks[1], (4, H, H), jnp.float32, -bound, bound)
    b_ih = jax.random.uniform(ks[2], (4, 1, H), jnp.float32, -bound, bound)
    b_hh = jax.random.uniform(ks[3], (4, 1, H), jnp.float32, -bound, bound)
    b = b_ih + b_hh
    w_lin = jax.random.uniform(ks[4], (H, out_size), jnp.float32, -bound, bound)
    b_lin = jax.random.uniform(ks[5], (1, out_size), jnp.float32, -bound, bound)
    return w_ih, w_hh, b, w_lin, b_lin


def lstm_reference(seq, params):
    """Pure-JAX reference of the same forward pass, for correctness checking."""
    w_ih, w_hh, b, w_lin, b_lin = params
    input_size = w_ih.shape[1]
    H = w_hh.shape[-1]
    x = seq.reshape(-1, input_size).astype(jnp.float32)
    h = jnp.zeros((1, H), jnp.float32)
    c = jnp.zeros((1, H), jnp.float32)
    for t in range(x.shape[0]):
        x_t = x[t:t + 1]
        i = jax.nn.sigmoid(x_t @ w_ih[0] + h @ w_hh[0] + b[0])
        f = jax.nn.sigmoid(x_t @ w_ih[1] + h @ w_hh[1] + b[1])
        g = jnp.tanh(x_t @ w_ih[2] + h @ w_hh[2] + b[2])
        o = jax.nn.sigmoid(x_t @ w_ih[3] + h @ w_hh[3] + b[3])
        c = f * c + i * g
        h = o * jnp.tanh(c)
    return (h @ w_lin + b_lin)[0]


if __name__ == "__main__":
    key = jax.random.PRNGKey(0)
    k_param, k_seq = jax.random.split(key)

    input_size, hidden_size, out_size = 1, 50, 1
    seq_len = 8

    params = init_params(k_param, input_size, hidden_size, out_size)
    # One-time packing (init-time, not on the per-call path).
    packed = pack_params(params)
    packed = tuple(jax.block_until_ready(p) for p in packed)

    seq = jax.random.normal(k_seq, (seq_len,), jnp.float32)

    pred = lstm_forward_packed(seq, *packed)
    pred = jax.block_until_ready(pred)

    ref = lstm_reference(seq, params)
    assert pred.shape == (out_size,)
    assert jnp.allclose(pred, ref, atol=1e-5, rtol=1e-5), (pred, ref)

    print("KERNEL_OK")
</pallas_src>

<mosaic_0001>
module attributes {stable_mosaic.version = 11 : i64} {
  func.func @lstm_kernel(%arg0: memref<8x1xf32, #tpu.memory_space<vmem>>, %arg1: memref<1x512xf32, #tpu.memory_space<vmem>>, %arg2: memref<128x512xf32, #tpu.memory_space<vmem>>, %arg3: memref<1x512xf32, #tpu.memory_space<vmem>>, %arg4: memref<1x128xf32, #tpu.memory_space<vmem>>, %arg5: memref<1x1xf32, #tpu.memory_space<vmem>>, %arg6: memref<1x1xf32, #tpu.memory_space<vmem>>) attributes {dimension_semantics = [], scalar_prefetch = 0 : i64, scratch_operands = 0 : i64, tpu.core_type = #tpu.core_type<tc>} {
    %c0 = arith.constant 0 : index
    %c0_0 = arith.constant 0 : index
    %0 = vector.load %arg0[%c0, %c0_0] : memref<8x1xf32, #tpu.memory_space<vmem>>, vector<8x1xf32>
    %c0_1 = arith.constant 0 : index
    %c0_2 = arith.constant 0 : index
    %1 = vector.load %arg1[%c0_1, %c0_2] : memref<1x512xf32, #tpu.memory_space<vmem>>, vector<1x512xf32>
    %2 = vector.broadcast %0 : vector<8x1xf32> to vector<8x512xf32>
    %3 = vector.broadcast %1 : vector<1x512xf32> to vector<8x512xf32>
    %4 = arith.mulf %2, %3 : vector<8x512xf32>
    %c0_3 = arith.constant 0 : index
    %c0_4 = arith.constant 0 : index
    %5 = vector.load %arg3[%c0_3, %c0_4] : memref<1x512xf32, #tpu.memory_space<vmem>>, vector<1x512xf32>
    %6 = vector.broadcast %5 : vector<1x512xf32> to vector<8x512xf32>
    %7 = arith.addf %4, %6 : vector<8x512xf32>
    %cst = arith.constant 0.000000e+00 : f32
    %8 = vector.broadcast %cst : f32 to vector<1x128xf32>
    %cst_5 = arith.constant 0.000000e+00 : f32
    %9 = vector.broadcast %cst_5 : f32 to vector<1x128xf32>
    %10 = vector.extract_strided_slice %7 {offsets = [0, 0], sizes = [1, 512], strides = [1, 1]} : vector<8x512xf32> to vector<1x512xf32>
    %c0_6 = arith.constant 0 : index
    %c0_7 = arith.constant 0 : index
    %11 = vector.load %arg2[%c0_6, %c0_7] : memref<128x512xf32, #tpu.memory_space<vmem>>, vector<128x512xf32>
    %cst_8 = arith.constant dense<0.000000e+00> : vector<1x512xf32>
    %12 = tpu.matmul %8, %11, %cst_8 {dimension_numbers = #tpu.dot_dimension_numbers<[1], [0], [0], [1], [0, 0, 1, 1], [], []>} : vector<1x128xf32>, vector<128x512xf32>, vector<1x512xf32> -> vector<1x512xf32>
    %13 = arith.addf %10, %12 : vector<1x512xf32>
    %14 = vector.extract_strided_slice %13 {offsets = [0, 0], sizes = [1, 384], strides = [1, 1]} : vector<1x512xf32> to vector<1x384xf32>
    %15 = arith.negf %14 : vector<1x384xf32>
    %16 = math.exp %15 : vector<1x384xf32>
    %cst_9 = arith.constant 1.000000e+00 : f32
    %17 = vector.broadcast %cst_9 : f32 to vector<1x384xf32>
    %18 = arith.addf %17, %16 : vector<1x384xf32>
    %19 = arith.divf %17, %18 : vector<1x384xf32>
    %20 = vector.extract_strided_slice %13 {offsets = [0, 384], sizes = [1, 128], strides = [1, 1]} : vector<1x512xf32> to vector<1x128xf32>
    %21 = math.tanh %20 : vector<1x128xf32>
    %22 = vector.extract_strided_slice %19 {offsets = [0, 0], sizes = [1, 128], strides = [1, 1]} : vector<1x384xf32> to vector<1x128xf32>
    %23 = vector.extract_strided_slice %19 {offsets = [0, 128], sizes = [1, 128], strides = [1, 1]} : vector<1x384xf32> to vector<1x128xf32>
    %24 = vector.extract_strided_slice %19 {offsets = [0, 256], sizes = [1, 128], strides = [1, 1]} : vector<1x384xf32> to vector<1x128xf32>
    %25 = arith.mulf %23, %9 : vector<1x128xf32>
    %26 = arith.mulf %22, %21 : vector<1x128xf32>
    %27 = arith.addf %25, %26 : vector<1x128xf32>
    %28 = math.tanh %27 : vector<1x128xf32>
    %29 = arith.mulf %24, %28 : vector<1x128xf32>
    %30 = vector.extract_strided_slice %7 {offsets = [1, 0], sizes = [1, 512], strides = [1, 1]} : vector<8x512xf32> to vector<1x512xf32>
    %c0_10 = arith.constant 0 : index
    %c0_11 = arith.constant 0 : index
    %31 = vector.load %arg2[%c0_10, %c0_11] : memref<128x512xf32, #tpu.memory_space<vmem>>, vector<128x512xf32>
    %cst_12 = arith.constant dense<0.000000e+00> : vector<1x512xf32>
    %32 = tpu.matmul %29, %31, %cst_12 {dimension_numbers = #tpu.dot_dimension_numbers<[1], [0], [0], [1], [0, 0, 1, 1], [], []>} : vector<1x128xf32>, vector<128x512xf32>, vector<1x512xf32> -> vector<1x512xf32>
    %33 = arith.addf %30, %32 : vector<1x512xf32>
    %34 = vector.extract_strided_slice %33 {offsets = [0, 0], sizes = [1, 384], strides = [1, 1]} : vector<1x512xf32> to vector<1x384xf32>
    %35 = arith.negf %34 : vector<1x384xf32>
    %36 = math.exp %35 : vector<1x384xf32>
    %cst_13 = arith.constant 1.000000e+00 : f32
    %37 = vector.broadcast %cst_13 : f32 to vector<1x384xf32>
    %38 = arith.addf %37, %36 : vector<1x384xf32>
    %39 = arith.divf %37, %38 : vector<1x384xf32>
    %40 = vector.extract_strided_slice %33 {offsets = [0, 384], sizes = [1, 128], strides = [1, 1]} : vector<1x512xf32> to vector<1x128xf32>
    %41 = math.tanh %40 : vector<1x128xf32>
    %42 = vector.extract_strided_slice %39 {offsets = [0, 0], sizes = [1, 128], strides = [1, 1]} : vector<1x384xf32> to vector<1x128xf32>
    %43 = vector.extract_strided_slice %39 {offsets = [0, 128], sizes = [1, 128], strides = [1, 1]} : vector<1x384xf32> to vector<1x128xf32>
    %44 = vector.extract_strided_slice %39 {offsets = [0, 256], sizes = [1, 128], strides = [1, 1]} : vector<1x384xf32> to vector<1x128xf32>
    %45 = arith.mulf %43, %27 : vector<1x128xf32>
    %46 = arith.mulf %42, %41 : vector<1x128xf32>
    %47 = arith.addf %45, %46 : vector<1x128xf32>
    %48 = math.tanh %47 : vector<1x128xf32>
    %49 = arith.mulf %44, %48 : vector<1x128xf32>
    %50 = vector.extract_strided_slice %7 {offsets = [2, 0], sizes = [1, 512], strides = [1, 1]} : vector<8x512xf32> to vector<1x512xf32>
    %c0_14 = arith.constant 0 : index
    %c0_15 = arith.constant 0 : index
    %51 = vector.load %arg2[%c0_14, %c0_15] : memref<128x512xf32, #tpu.memory_space<vmem>>, vector<128x512xf32>
    %cst_16 = arith.constant dense<0.000000e+00> : vector<1x512xf32>
    %52 = tpu.matmul %49, %51, %cst_16 {dimension_numbers = #tpu.dot_dimension_numbers<[1], [0], [0], [1], [0, 0, 1, 1], [], []>} : vector<1x128xf32>, vector<128x512xf32>, vector<1x512xf32> -> vector<1x512xf32>
    %53 = arith.addf %50, %52 : vector<1x512xf32>
    %54 = vector.extract_strided_slice %53 {offsets = [0, 0], sizes = [1, 384], strides = [1, 1]} : vector<1x512xf32> to vector<1x384xf32>
    %55 = arith.negf %54 : vector<1x384xf32>
    %56 = math.exp %55 : vector<1x384xf32>
    %cst_17 = arith.constant 1.000000e+00 : f32
    %57 = vector.broadcast %cst_17 : f32 to vector<1x384xf32>
    %58 = arith.addf %57, %56 : vector<1x384xf32>
    %59 = arith.divf %57, %58 : vector<1x384xf32>
    %60 = vector.extract_strided_slice %53 {offsets = [0, 384], sizes = [1, 128], strides = [1, 1]} : vector<1x512xf32> to vector<1x128xf32>
    %61 = math.tanh %60 : vector<1x128xf32>
    %62 = vector.extract_strided_slice %59 {offsets = [0, 0], sizes = [1, 128], strides = [1, 1]} : vector<1x384xf32> to vector<1x128xf32>
    %63 = vector.extract_strided_slice %59 {offsets = [0, 128], sizes = [1, 128], strides = [1, 1]} : vector<1x384xf32> to vector<1x128xf32>
    %64 = vector.extract_strided_slice %59 {offsets = [0, 256], sizes = [1, 128], strides = [1, 1]} : vector<1x384xf32> to vector<1x128xf32>
    %65 = arith.mulf %63, %47 : vector<1x128xf32>
    %66 = arith.mulf %62, %61 : vector<1x128xf32>
    %67 = arith.addf %65, %66 : vector<1x128xf32>
    %68 = math.tanh %67 : vector<1x128xf32>
    %69 = arith.mulf %64, %68 : vector<1x128xf32>
    %70 = vector.extract_strided_slice %7 {offsets = [3, 0], sizes = [1, 512], strides = [1, 1]} : vector<8x512xf32> to vector<1x512xf32>
    %c0_18 = arith.constant 0 : index
    %c0_19 = arith.constant 0 : index
    %71 = vector.load %arg2[%c0_18, %c0_19] : memref<128x512xf32, #tpu.memory_space<vmem>>, vector<128x512xf32>
    %cst_20 = arith.constant dense<0.000000e+00> : vector<1x512xf32>
    %72 = tpu.matmul %69, %71, %cst_20 {dimension_numbers = #tpu.dot_dimension_numbers<[1], [0], [0], [1], [0, 0, 1, 1], [], []>} : vector<1x128xf32>, vector<128x512xf32>, vector<1x512xf32> -> vector<1x512xf32>
    %73 = arith.addf %70, %72 : vector<1x512xf32>
    %74 = vector.extract_strided_slice %73 {offsets = [0, 0], sizes = [1, 384], strides = [1, 1]} : vector<1x512xf32> to vector<1x384xf32>
    %75 = arith.negf %74 : vector<1x384xf32>
    %76 = math.exp %75 : vector<1x384xf32>
    %cst_21 = arith.constant 1.000000e+00 : f32
    %77 = vector.broadcast %cst_21 : f32 to vector<1x384xf32>
    %78 = arith.addf %77, %76 : vector<1x384xf32>
    %79 = arith.divf %77, %78 : vector<1x384xf32>
    %80 = vector.extract_strided_slice %73 {offsets = [0, 384], sizes = [1, 128], strides = [1, 1]} : vector<1x512xf32> to vector<1x128xf32>
    %81 = math.tanh %80 : vector<1x128xf32>
    %82 = vector.extract_strided_slice %79 {offsets = [0, 0], sizes = [1, 128], strides = [1, 1]} : vector<1x384xf32> to vector<1x128xf32>
    %83 = vector.extract_strided_slice %79 {offsets = [0, 128], sizes = [1, 128], strides = [1, 1]} : vector<1x384xf32> to vector<1x128xf32>
    %84 = vector.extract_strided_slice %79 {offsets = [0, 256], sizes = [1, 128], strides = [1, 1]} : vector<1x384xf32> to vector<1x128xf32>
    %85 = arith.mulf %83, %67 : vector<1x128xf32>
    %86 = arith.mulf %82, %81 : vector<1x128xf32>
    %87 = arith.addf %85, %86 : vector<1x128xf32>
    %88 = math.tanh %87 : vector<1x128xf32>
    %89 = arith.mulf %84, %88 : vector<1x128xf32>
    %90 = vector.extract_strided_slice %7 {offsets = [4, 0], sizes = [1, 512], strides = [1, 1]} : vector<8x512xf32> to vector<1x512xf32>
    %c0_22 = arith.constant 0 : index
    %c0_23 = arith.constant 0 : index
    %91 = vector.load %arg2[%c0_22, %c0_23] : memref<128x512xf32, #tpu.memory_space<vmem>>, vector<128x512xf32>
    %cst_24 = arith.constant dense<0.000000e+00> : vector<1x512xf32>
    %92 = tpu.matmul %89, %91, %cst_24 {dimension_numbers = #tpu.dot_dimension_numbers<[1], [0], [0], [1], [0, 0, 1, 1], [], []>} : vector<1x128xf32>, vector<128x512xf32>, vector<1x512xf32> -> vector<1x512xf32>
    %93 = arith.addf %90, %92 : vector<1x512xf32>
    %94 = vector.extract_strided_slice %93 {offsets = [0, 0], sizes = [1, 384], strides = [1, 1]} : vector<1x512xf32> to vector<1x384xf32>
    %95 = arith.negf %94 : vector<1x384xf32>
    %96 = math.exp %95 : vector<1x384xf32>
    %cst_25 = arith.constant 1.000000e+00 : f32
    %97 = vector.broadcast %cst_25 : f32 to vector<1x384xf32>
    %98 = arith.addf %97, %96 : vector<1x384xf32>
    %99 = arith.divf %97, %98 : vector<1x384xf32>
    %100 = vector.extract_strided_slice %93 {offsets = [0, 384], sizes = [1, 128], strides = [1, 1]} : vector<1x512xf32> to vector<1x128xf32>
    %101 = math.tanh %100 : vector<1x128xf32>
    %102 = vector.extract_strided_slice %99 {offsets = [0, 0], sizes = [1, 128], strides = [1, 1]} : vector<1x384xf32> to vector<1x128xf32>
    %103 = vector.extract_strided_slice %99 {offsets = [0, 128], sizes = [1, 128], strides = [1, 1]} : vector<1x384xf32> to vector<1x128xf32>
    %104 = vector.extract_strided_slice %99 {offsets = [0, 256], sizes = [1, 128], strides = [1, 1]} : vector<1x384xf32> to vector<1x128xf32>
    %105 = arith.mulf %103, %87 : vector<1x128xf32>
    %106 = arith.mulf %102, %101 : vector<1x128xf32>
    %107 = arith.addf %105, %106 : vector<1x128xf32>
    %108 = math.tanh %107 : vector<1x128xf32>
    %109 = arith.mulf %104, %108 : vector<1x128xf32>
    %110 = vector.extract_strided_slice %7 {offsets = [5, 0], sizes = [1, 512], strides = [1, 1]} : vector<8x512xf32> to vector<1x512xf32>
    %c0_26 = arith.constant 0 : index
    %c0_27 = arith.constant 0 : index
    %111 = vector.load %arg2[%c0_26, %c0_27] : memref<128x512xf32, #tpu.memory_space<vmem>>, vector<128x512xf32>
    %cst_28 = arith.constant dense<0.000000e+00> : vector<1x512xf32>
    %112 = tpu.matmul %109, %111, %cst_28 {dimension_numbers = #tpu.dot_dimension_numbers<[1], [0], [0], [1], [0, 0, 1, 1], [], []>} : vector<1x128xf32>, vector<128x512xf32>, vector<1x512xf32> -> vector<1x512xf32>
    %113 = arith.addf %110, %112 : vector<1x512xf32>
    %114 = vector.extract_strided_slice %113 {offsets = [0, 0], sizes = [1, 384], strides = [1, 1]} : vector<1x512xf32> to vector<1x384xf32>
    %115 = arith.negf %114 : vector<1x384xf32>
    %116 = math.exp %115 : vector<1x384xf32>
    %cst_29 = arith.constant 1.000000e+00 : f32
    %117 = vector.broadcast %cst_29 : f32 to vector<1x384xf32>
    %118 = arith.addf %117, %116 : vector<1x384xf32>
    %119 = arith.divf %117, %118 : vector<1x384xf32>
    %120 = vector.extract_strided_slice %113 {offsets = [0, 384], sizes = [1, 128], strides = [1, 1]} : vector<1x512xf32> to vector<1x128xf32>
    %121 = math.tanh %120 : vector<1x128xf32>
    %122 = vector.extract_strided_slice %119 {offsets = [0, 0], sizes = [1, 128], strides = [1, 1]} : vector<1x384xf32> to vector<1x128xf32>
    %123 = vector.extract_strided_slice %119 {offsets = [0, 128], sizes = [1, 128], strides = [1, 1]} : vector<1x384xf32> to vector<1x128xf32>
    %124 = vector.extract_strided_slice %119 {offsets = [0, 256], sizes = [1, 128], strides = [1, 1]} : vector<1x384xf32> to vector<1x128xf32>
    %125 = arith.mulf %123, %107 : vector<1x128xf32>
    %126 = arith.mulf %122, %121 : vector<1x128xf32>
    %127 = arith.addf %125, %126 : vector<1x128xf32>
    %128 = math.tanh %127 : vector<1x128xf32>
    %129 = arith.mulf %124, %128 : vector<1x128xf32>
    %130 = vector.extract_strided_slice %7 {offsets = [6, 0], sizes = [1, 512], strides = [1, 1]} : vector<8x512xf32> to vector<1x512xf32>
    %c0_30 = arith.constant 0 : index
    %c0_31 = arith.constant 0 : index
    %131 = vector.load %arg2[%c0_30, %c0_31] : memref<128x512xf32, #tpu.memory_space<vmem>>, vector<128x512xf32>
    %cst_32 = arith.constant dense<0.000000e+00> : vector<1x512xf32>
    %132 = tpu.matmul %129, %131, %cst_32 {dimension_numbers = #tpu.dot_dimension_numbers<[1], [0], [0], [1], [0, 0, 1, 1], [], []>} : vector<1x128xf32>, vector<128x512xf32>, vector<1x512xf32> -> vector<1x512xf32>
    %133 = arith.addf %130, %132 : vector<1x512xf32>
    %134 = vector.extract_strided_slice %133 {offsets = [0, 0], sizes = [1, 384], strides = [1, 1]} : vector<1x512xf32> to vector<1x384xf32>
    %135 = arith.negf %134 : vector<1x384xf32>
    %136 = math.exp %135 : vector<1x384xf32>
    %cst_33 = arith.constant 1.000000e+00 : f32
    %137 = vector.broadcast %cst_33 : f32 to vector<1x384xf32>
    %138 = arith.addf %137, %136 : vector<1x384xf32>
    %139 = arith.divf %137, %138 : vector<1x384xf32>
    %140 = vector.extract_strided_slice %133 {offsets = [0, 384], sizes = [1, 128], strides = [1, 1]} : vector<1x512xf32> to vector<1x128xf32>
    %141 = math.tanh %140 : vector<1x128xf32>
    %142 = vector.extract_strided_slice %139 {offsets = [0, 0], sizes = [1, 128], strides = [1, 1]} : vector<1x384xf32> to vector<1x128xf32>
    %143 = vector.extract_strided_slice %139 {offsets = [0, 128], sizes = [1, 128], strides = [1, 1]} : vector<1x384xf32> to vector<1x128xf32>
    %144 = vector.extract_strided_slice %139 {offsets = [0, 256], sizes = [1, 128], strides = [1, 1]} : vector<1x384xf32> to vector<1x128xf32>
    %145 = arith.mulf %143, %127 : vector<1x128xf32>
    %146 = arith.mulf %142, %141 : vector<1x128xf32>
    %147 = arith.addf %145, %146 : vector<1x128xf32>
    %148 = math.tanh %147 : vector<1x128xf32>
    %149 = arith.mulf %144, %148 : vector<1x128xf32>
    %150 = vector.extract_strided_slice %7 {offsets = [7, 0], sizes = [1, 512], strides = [1, 1]} : vector<8x512xf32> to vector<1x512xf32>
    %c0_34 = arith.constant 0 : index
    %c0_35 = arith.constant 0 : index
    %151 = vector.load %arg2[%c0_34, %c0_35] : memref<128x512xf32, #tpu.memory_space<vmem>>, vector<128x512xf32>
    %cst_36 = arith.constant dense<0.000000e+00> : vector<1x512xf32>
    %152 = tpu.matmul %149, %151, %cst_36 {dimension_numbers = #tpu.dot_dimension_numbers<[1], [0], [0], [1], [0, 0, 1, 1], [], []>} : vector<1x128xf32>, vector<128x512xf32>, vector<1x512xf32> -> vector<1x512xf32>
    %153 = arith.addf %150, %152 : vector<1x512xf32>
    %154 = vector.extract_strided_slice %153 {offsets = [0, 0], sizes = [1, 384], strides = [1, 1]} : vector<1x512xf32> to vector<1x384xf32>
    %155 = arith.negf %154 : vector<1x384xf32>
    %156 = math.exp %155 : vector<1x384xf32>
    %cst_37 = arith.constant 1.000000e+00 : f32
    %157 = vector.broadcast %cst_37 : f32 to vector<1x384xf32>
    %158 = arith.addf %157, %156 : vector<1x384xf32>
    %159 = arith.divf %157, %158 : vector<1x384xf32>
    %160 = vector.extract_strided_slice %153 {offsets = [0, 384], sizes = [1, 128], strides = [1, 1]} : vector<1x512xf32> to vector<1x128xf32>
    %161 = math.tanh %160 : vector<1x128xf32>
    %162 = vector.extract_strided_slice %159 {offsets = [0, 0], sizes = [1, 128], strides = [1, 1]} : vector<1x384xf32> to vector<1x128xf32>
    %163 = vector.extract_strided_slice %159 {offsets = [0, 128], sizes = [1, 128], strides = [1, 1]} : vector<1x384xf32> to vector<1x128xf32>
    %164 = vector.extract_strided_slice %159 {offsets = [0, 256], sizes = [1, 128], strides = [1, 1]} : vector<1x384xf32> to vector<1x128xf32>
    %165 = arith.mulf %163, %147 : vector<1x128xf32>
    %166 = arith.mulf %162, %161 : vector<1x128xf32>
    %167 = arith.addf %165, %166 : vector<1x128xf32>
    %168 = math.tanh %167 : vector<1x128xf32>
    %169 = arith.mulf %164, %168 : vector<1x128xf32>
    %c0_38 = arith.constant 0 : index
    %c0_39 = arith.constant 0 : index
    %170 = vector.load %arg4[%c0_38, %c0_39] : memref<1x128xf32, #tpu.memory_space<vmem>>, vector<1x128xf32>
    %171 = arith.mulf %170, %169 : vector<1x128xf32>
    %cst_40 = arith.constant dense<0.000000e+00> : vector<1xf32>
    %172 = vector.multi_reduction <add>, %171, %cst_40 [1] : vector<1x128xf32> to vector<1xf32>
    %173 = vector.shape_cast %172 : vector<1xf32> to vector<1x1xf32>
    %c0_41 = arith.constant 0 : index
    %c0_42 = arith.constant 0 : index
    %174 = vector.load %arg5[%c0_41, %c0_42] : memref<1x1xf32, #tpu.memory_space<vmem>>, vector<1x1xf32>
    %175 = arith.addf %173, %174 : vector<1x1xf32>
    %c0_43 = arith.constant 0 : index
    %c0_44 = arith.constant 0 : index
    %176 = vector.load %arg6[%c0_43, %c0_44] : memref<1x1xf32, #tpu.memory_space<vmem>>, vector<1x1xf32>
    tpu.vector_store %arg6[%c0_43, %c0_44], %175 {strides = array<i32>} : memref<1x1xf32, #tpu.memory_space<vmem>>, vector<1x1xf32>,
    return
  }
}

</mosaic_0001>

<llo_original>
// kernel: lstm_forward_packed.1
$region0: #{lstm_forward_packed.1}
  #allocation0 [shape = 'u32[]', space=smem, size = 0x4, offset = 0x4, fixed_abs, tag = 'smem constant byte address 0x4 - core index']
  #allocation1 [shape = 'u32[144,128]{1,0:T(1,128)}', space=vmem, size = 0x12000, scoped, tag = 'internal scratch']
  #allocation2 [shape = 'f32[1,1]{1,0:T(1,128)S(1)}', space=vmem, size = 0x200, scoped, tag = 'scoped memory for lstm_forward_packed.1']
  %s0 = inlined_call_operand.vmem [shape: f32[8,1], index: 0, kind: input, shape index: {}]
  %s1 = inlined_call_operand.vmem [shape: f32[1,512], index: 1, kind: input, shape index: {}]
  %s2 = inlined_call_operand.hbm [shape: f32[128,512], index: 2, kind: input, shape index: {}]
  %s3 = inlined_call_operand.vmem [shape: f32[1,512], index: 3, kind: input, shape index: {}]
  %s4 = inlined_call_operand.vmem [shape: f32[1,128], index: 4, kind: input, shape index: {}]
  %s5 = inlined_call_operand.<no memory space> [shape: f32[1,1], index: 5, kind: input, shape index: {}]
  %s6 = inlined_call_operand.hbm [shape: f32[1,1], index: 6, kind: output, shape index: {}]
  %s7 = sld [smem:[#allocation0]]
  $region38: #{lstm_forward_packed.1} parent=0
    _
  %s9 = ssub.s32 1, %s7
  %s10 = scalar_select 0, %s9, %s7
  %v11 = vstv %s5
  %12 = vst [vmem:[#allocation2] sm:$0x1] %v11
  $region1: #{lstm_forward_packed.1} parent=0
    #allocation3 [shape = 'u8[262144]{0}', space=vmem, size = 0x40000, scoped, tag = 'input window, operand 2, single buffered']
    #allocation4 [shape = 's32[1]{0}', space=sflag, size = 0x4, scoped, tag = 'scoped memory for lstm_forward_packed.1']
    #allocation5 [shape = 's32[1]{0}', space=sflag, size = 0x4, scoped, tag = 'scoped memory for lstm_forward_packed.1']
    #allocation6 [shape = 'u8[512]{0}', space=vmem, size = 0x400, scoped, tag = 'output window, operand 0, single buffered']
    %13 = vsyncpa [#allocation4], 0
    %14 = vsyncpa [#allocation5], 0
    // Predicated region
    $region2: #{lstm_forward_packed.1} parent=1 // pred_check
      _
    $region3: #{lstm_forward_packed.1} parent=1 // pred_check_branch
      %16 = sbr.rel (0) target = $region5
    $region4: #{lstm_forward_packed.1} parent=1 // pred_region
      _
    $region5: #{lstm_forward_packed.1} parent=1 // pred_fallthru
      _
    // Predicated region
    $region6: #{lstm_forward_packed.1} parent=1 // pred_check
      _
    $region7: #{lstm_forward_packed.1} parent=1 // pred_check_branch
      %18 = sbr.rel (0) target = $region9
    $region8: #{lstm_forward_packed.1} parent=1 // pred_region
      _
    $region9: #{lstm_forward_packed.1} parent=1 // pred_fallthru
      _
    // Predicated region
    $region10: #{lstm_forward_packed.1} parent=1 // pred_check
      _
    $region11: #{lstm_forward_packed.1} parent=1 // pred_check_branch
      %20 = sbr.rel (0) target = $region13
    $region12: #{lstm_forward_packed.1} parent=1 // pred_region
      %s22 = ssub.s32 8192, 8192
      %23 = vsyncadd [#allocation4], %s22
      %s24 = sshll.u32 [#allocation3], 4
      %s25 = int_to_ptr.vmem [resolvable:$true] %s24
      %30 = dma.hbm_to_vmem [thread:$0]  %s2, 8192, %s25, [#allocation4], 512, 512, 32
    $region13: #{lstm_forward_packed.1} parent=1 // pred_fallthru
      _
    // Predicated region
    $region14: #{lstm_forward_packed.1} parent=1 // pred_check
      _
    $region15: #{lstm_forward_packed.1} parent=1 // pred_check_branch
      %32 = sbr.rel (0) target = $region17
    $region16: #{lstm_forward_packed.1} parent=1 // pred_region
      _
    $region17: #{lstm_forward_packed.1} parent=1 // pred_fallthru
      _
    // Predicated region
    $region18: #{lstm_forward_packed.1} parent=1 // pred_check
      _
    $region19: #{lstm_forward_packed.1} parent=1 // pred_check_branch
      %34 = sbr.rel (0) target = $region21
    $region20: #{lstm_forward_packed.1} parent=1 // pred_region
      _
    $region21: #{lstm_forward_packed.1} parent=1 // pred_fallthru
      _
    // Predicated region
    $region22: #{lstm_forward_packed.1} parent=1 // pred_check
      _
    $region23: #{lstm_forward_packed.1} parent=1 // pred_check_branch
      %36 = sbr.rel (0) target = $region25
    $region24: #{lstm_forward_packed.1} parent=1 // pred_region
      _
    $region25: #{lstm_forward_packed.1} parent=1 // pred_fallthru
      _
    // Predicated region
    $region26: #{lstm_forward_packed.1} parent=1 // pred_check
      _
    $region27: #{lstm_forward_packed.1} parent=1 // pred_check_branch
      %38 = sbr.rel (0) target = $region29
    $region28: #{lstm_forward_packed.1} parent=1 // pred_region
      %39 = dma.done [#allocation4], 8192
    $region29: #{lstm_forward_packed.1} parent=1 // pred_fallthru
      _
    %v40 = vld [vmem:[%s0] sm:$0xff]
    %v41 = vld [vmem:[%s1] sm:$0xf]
    %43 = vset.pattern.permute.xlu0 0
    %44 = vperm.xlu0 %43, %v40
    %v45 = vpop.permute.xlu0 %44
    %v48 = vlaneseq
    %v49 = vshrl.u32 %v48, 7
    %v50 = vsub.s32 0, %v49
    %v51 = vrot.slane %v41, %v50
    %v52 = vlaneseq
    %v53 = vshrl.u32 %v52, 7
    %v54 = vsub.s32 1, %v53
    %v55 = vrot.slane %v41, %v54
    %v56 = vlaneseq
    %v57 = vshrl.u32 %v56, 7
    %v58 = vsub.s32 2, %v57
    %v59 = vrot.slane %v41, %v58
    %v60 = vlaneseq
    %v61 = vshrl.u32 %v60, 7
    %v62 = vsub.s32 3, %v61
    %v63 = vrot.slane %v41, %v62
    %v68 = vmul.f32 %v45, %v51
    %v69 = vmul.f32 %v45, %v55
    %v70 = vmul.f32 %v45, %v59
    %v71 = vmul.f32 %v45, %v63
    %v72 = vld [vmem:[%s3] sm:$0xf]
    %v74 = vlaneseq
    %v75 = vshrl.u32 %v74, 7
    %v76 = vsub.s32 0, %v75
    %v77 = vrot.slane %v72, %v76
    %v78 = vlaneseq
    %v79 = vshrl.u32 %v78, 7
    %v80 = vsub.s32 1, %v79
    %v81 = vrot.slane %v72, %v80
    %v82 = vlaneseq
    %v83 = vshrl.u32 %v82, 7
    %v84 = vsub.s32 2, %v83
    %v85 = vrot.slane %v72, %v84
    %v86 = vlaneseq
    %v87 = vshrl.u32 %v86, 7
    %v88 = vsub.s32 3, %v87
    %v89 = vrot.slane %v72, %v88
    %v94 = vadd.f32 %v68, %v77
    %v95 = vadd.f32 %v69, %v81
    %v96 = vadd.f32 %v70, %v85
    %v97 = vadd.f32 %v71, %v89
    %v98 = vld [vmem:[#allocation3] sm:$0xff]
    %v99 = vld [vmem:[#allocation3 + $0x8] sm:$0xff]
    %v100 = vld [vmem:[#allocation3 + $0x10] sm:$0xff]
    %v101 = vld [vmem:[#allocation3 + $0x18] sm:$0xff]
    %v102 = vld [vmem:[#allocation3 + $0x20] sm:$0xff]
    %v103 = vld [vmem:[#allocation3 + $0x28] sm:$0xff]
    %v104 = vld [vmem:[#allocation3 + $0x30] sm:$0xff]
    %v105 = vld [vmem:[#allocation3 + $0x38] sm:$0xff]
    %v106 = vld [vmem:[#allocation3 + $0x40] sm:$0xff]
    %v107 = vld [vmem:[#allocation3 + $0x48] sm:$0xff]
    %v108 = vld [vmem:[#allocation3 + $0x50] sm:$0xff]
    %v109 = vld [vmem:[#allocation3 + $0x58] sm:$0xff]
    %v110 = vld [vmem:[#allocation3 + $0x60] sm:$0xff]
    %v111 = vld [vmem:[#allocation3 + $0x68] sm:$0xff]
    %v112 = vld [vmem:[#allocation3 + $0x70] sm:$0xff]
    %v113 = vld [vmem:[#allocation3 + $0x78] sm:$0xff]
    %v114 = vld [vmem:[#allocation3 + $0x80] sm:$0xff]
    %v115 = vld [vmem:[#allocation3 + $0x88] sm:$0xff]
    %v116 = vld [vmem:[#allocation3 + $0x90] sm:$0xff]
    %v117 = vld [vmem:[#allocation3 + $0x98] sm:$0xff]
    %v118 = vld [vmem:[#allocation3 + $0xa0] sm:$0xff]
    %v119 = vld [vmem:[#allocation3 + $0xa8] sm:$0xff]
    %v120 = vld [vmem:[#allocation3 + $0xb0] sm:$0xff]
    %v121 = vld [vmem:[#allocation3 + $0xb8] sm:$0xff]
    %v122 = vld [vmem:[#allocation3 + $0xc0] sm:$0xff]
    %v123 = vld [vmem:[#allocation3 + $0xc8] sm:$0xff]
    %v124 = vld [vmem:[#allocation3 + $0xd0] sm:$0xff]
    %v125 = vld [vmem:[#allocation3 + $0xd8] sm:$0xff]
    %v126 = vld [vmem:[#allocation3 + $0xe0] sm:$0xff]
    %v127 = vld [vmem:[#allocation3 + $0xe8] sm:$0xff]
    %v128 = vld [vmem:[#allocation3 + $0xf0] sm:$0xff]
    %v129 = vld [vmem:[#allocation3 + $0xf8] sm:$0xff]
    %v130 = vld [vmem:[#allocation3 + $0x100] sm:$0xff]
    %v131 = vld [vmem:[#allocation3 + $0x108] sm:$0xff]
    %v132 = vld [vmem:[#allocation3 + $0x110] sm:$0xff]
    %v133 = vld [vmem:[#allocation3 + $0x118] sm:$0xff]
    %v134 = vld [vmem:[#allocation3 + $0x120] sm:$0xff]
    %v135 = vld [vmem:[#allocation3 + $0x128] sm:$0xff]
    %v136 = vld [vmem:[#allocation3 + $0x130] sm:$0xff]
    %v137 = vld [vmem:[#allocation3 + $0x138] sm:$0xff]
    %v138 = vld [vmem:[#allocation3 + $0x140] sm:$0xff]
    %v139 = vld [vmem:[#allocation3 + $0x148] sm:$0xff]
    %v140 = vld [vmem:[#allocation3 + $0x150] sm:$0xff]
    %v141 = vld [vmem:[#allocation3 + $0x158] sm:$0xff]
    %v142 = vld [vmem:[#allocation3 + $0x160] sm:$0xff]
    %v143 = vld [vmem:[#allocation3 + $0x168] sm:$0xff]
    %v144 = vld [vmem:[#allocation3 + $0x170] sm:$0xff]
    %v145 = vld [vmem:[#allocation3 + $0x178] sm:$0xff]
    %v146 = vld [vmem:[#allocation3 + $0x180] sm:$0xff]
    %v147 = vld [vmem:[#allocation3 + $0x188] sm:$0xff]
    %v148 = vld [vmem:[#allocation3 + $0x190] sm:$0xff]
    %v149 = vld [vmem:[#allocation3 + $0x198] sm:$0xff]
    %v150 = vld [vmem:[#allocation3 + $0x1a0] sm:$0xff]
    %v151 = vld [vmem:[#allocation3 + $0x1a8] sm:$0xff]
    %v152 = vld [vmem:[#allocation3 + $0x1b0] sm:$0xff]
    %v153 = vld [vmem:[#allocation3 + $0x1b8] sm:$0xff]
    %v154 = vld [vmem:[#allocation3 + $0x1c0] sm:$0xff]
    %v155 = vld [vmem:[#allocation3 + $0x1c8] sm:$0xff]
    %v156 = vld [vmem:[#allocation3 + $0x1d0] sm:$0xff]
    %v157 = vld [vmem:[#allocation3 + $0x1d8] sm:$0xff]
    %v158 = vld [vmem:[#allocation3 + $0x1e0] sm:$0xff]
    %v159 = vld [vmem:[#allocation3 + $0x1e8] sm:$0xff]
    %v160 = vld [vmem:[#allocation3 + $0x1f0] sm:$0xff]
    %v161 = vld [vmem:[#allocation3 + $0x1f8] sm:$0xff]
    %162 = vmatprep.subr.mxu0 %v99
    %163 = vmatpush1.msra.mxu0 %v98
    %164 = vmatprep.subr.mxu0 %v103
    %165 = vmatpush1.msra.mxu0 %v102
    %166 = vmatprep.subr.mxu0 %v107
    %167 = vmatpush1.msra.mxu0 %v106
    %168 = vmatprep.subr.mxu0 %v111
    %169 = vmatpush1.msra.mxu0 %v110
    %170 = vmatprep.subr.mxu0 %v115
    %171 = vmatpush1.msra.mxu0 %v114
    %172 = vmatprep.subr.mxu0 %v119
    %173 = vmatpush1.msra.mxu0 %v118
    %174 = vmatprep.subr.mxu0 %v123
    %175 = vmatpush1.msra.mxu0 %v122
    %176 = vmatprep.subr.mxu0 %v127
    %177 = vmatpush1.msra.mxu0 %v126
    %178 = vmatprep.subr.mxu0 %v131
    %179 = vmatpush1.msra.mxu0 %v130
    %180 = vmatprep.subr.mxu0 %v135
    %181 = vmatpush1.msra.mxu0 %v134
    %182 = vmatprep.subr.mxu0 %v139
    %183 = vmatpush1.msra.mxu0 %v138
    %184 = vmatprep.subr.mxu0 %v143
    %185 = vmatpush1.msra.mxu0 %v142
    %186 = vmatprep.subr.mxu0 %v147
    %187 = vmatpush1.msra.mxu0 %v146
    %188 = vmatprep.subr.mxu0 %v151
    %189 = vmatpush1.msra.mxu0 %v150
    %190 = vmatprep.subr.mxu0 %v155
    %191 = vmatpush1.msra.mxu0 %v154
    %192 = vmatprep.subr.mxu0 %v159
    %193 = vmatpush1.msra.mxu0 %v158
    %194 = vmatprep.subr.mxu0 0.0
    %195 = vmatpush1.msra.mxu0 0.0
    %196 = vmatprep.subr.mxu0 0.0
    %197 = vmatpush1.msra.mxu0 0.0
    %198 = vmatprep.subr.mxu0 0.0
    %199 = vmatpush1.msra.mxu0 0.0
    %200 = vmatprep.subr.mxu0 0.0
    %201 = vmatpush1.msra.mxu0 0.0
    %202 = vmatprep.subr.mxu0 0.0
    %203 = vmatpush1.msra.mxu0 0.0
    %204 = vmatprep.subr.mxu0 0.0
    %205 = vmatpush1.msra.mxu0 0.0
    %206 = vmatprep.subr.mxu0 0.0
    %207 = vmatpush1.msra.mxu0 0.0
    %208 = vmatprep.subr.mxu0 0.0
    %209 = vmatpush1.msra.mxu0 0.0
    %210 = vmatprep.subr.mxu0 0.0
    %211 = vmatpush1.msra.mxu0 0.0
    %212 = vmatprep.subr.mxu0 0.0
    %213 = vmatpush1.msra.mxu0 0.0
    %214 = vmatprep.subr.mxu0 0.0
    %215 = vmatpush1.msra.mxu0 0.0
    %216 = vmatprep.subr.mxu0 0.0
    %217 = vmatpush1.msra.mxu0 0.0
    %218 = vmatprep.subr.mxu0 0.0
    %219 = vmatpush1.msra.mxu0 0.0
    %220 = vmatprep.subr.mxu0 0.0
    %221 = vmatpush1.msra.mxu0 0.0
    %222 = vmatprep.subr.mxu0 0.0
    %223 = vmatpush1.msra.mxu0 0.0
    %224 = vmatprep.subr.mxu0 0.0
    %225 = vmatpush1.msra.mxu0 0.0
    %226 = vmatprep.mubr.f32.mxu0 0.0
    %227 = vmatmul.mubr.f32.gmra.mrb[0].mxu0 0.0
    %v228 = vpop.f32.mrb[0].mxu0
    %v229 = vadd.f32 0.0, %v228
    %v230 = vpop.f32.mrb[0].mxu0
    %v231 = vadd.f32 0.0, %v230
    %232 = vdwg.mxu0
    %233 = vmatprep.subr.mxu0 %v101
    %234 = vmatpush1.msra.mxu0 %v100
    %235 = vmatprep.subr.mxu0 %v105
    %236 = vmatpush1.msra.mxu0 %v104
    %237 = vmatprep.subr.mxu0 %v109
    %238 = vmatpush1.msra.mxu0 %v108
    %239 = vmatprep.subr.mxu0 %v113
    %240 = vmatpush1.msra.mxu0 %v112
    %241 = vmatprep.subr.mxu0 %v117
    %242 = vmatpush1.msra.mxu0 %v116
    %243 = vmatprep.subr.mxu0 %v121
    %244 = vmatpush1.msra.mxu0 %v120
    %245 = vmatprep.subr.mxu0 %v125
    %246 = vmatpush1.msra.mxu0 %v124
    %247 = vmatprep.subr.mxu0 %v129
    %248 = vmatpush1.msra.mxu0 %v128
    %249 = vmatprep.subr.mxu0 %v133
    %250 = vmatpush1.msra.mxu0 %v132
    %251 = vmatprep.subr.mxu0 %v137
    %252 = vmatpush1.msra.mxu0 %v136
    %253 = vmatprep.subr.mxu0 %v141
    %254 = vmatpush1.msra.mxu0 %v140
    %255 = vmatprep.subr.mxu0 %v145
    %256 = vmatpush1.msra.mxu0 %v144
    %257 = vmatprep.subr.mxu0 %v149
    %258 = vmatpush1.msra.mxu0 %v148
    %259 = vmatprep.subr.mxu0 %v153
    %260 = vmatpush1.msra.mxu0 %v152
    %261 = vmatprep.subr.mxu0 %v157
    %262 = vmatpush1.msra.mxu0 %v156
    %263 = vmatprep.subr.mxu0 %v161
    %264 = vmatpush1.msra.mxu0 %v160
    %265 = vmatprep.subr.mxu0 0.0
    %266 = vmatpush1.msra.mxu0 0.0
    %267 = vmatprep.subr.mxu0 0.0
    %268 = vmatpush1.msra.mxu0 0.0
    %269 = vmatprep.subr.mxu0 0.0
    %270 = vmatpush1.msra.mxu0 0.0
    %271 = vmatprep.subr.mxu0 0.0
    %272 = vmatpush1.msra.mxu0 0.0
    %273 = vmatprep.subr.mxu0 0.0
    %274 = vmatpush1.msra.mxu0 0.0
    %275 = vmatprep.subr.mxu0 0.0
    %276 = vmatpush1.msra.mxu0 0.0
    %277 = vmatprep.subr.mxu0 0.0
    %278 = vmatpush1.msra.mxu0 0.0
    %279 = vmatprep.subr.mxu0 0.0
    %280 = vmatpush1.msra.mxu0 0.0
    %281 = vmatprep.subr.mxu0 0.0
    %282 = vmatpush1.msra.mxu0 0.0
    %283 = vmatprep.subr.mxu0 0.0
    %284 = vmatpush1.msra.mxu0 0.0
    %285 = vmatprep.subr.mxu0 0.0
    %286 = vmatpush1.msra.mxu0 0.0
    %287 = vmatprep.subr.mxu0 0.0
    %288 = vmatpush1.msra.mxu0 0.0
    %289 = vmatprep.subr.mxu0 0.0
    %290 = vmatpush1.msra.mxu0 0.0
    %291 = vmatprep.subr.mxu0 0.0
    %292 = vmatpush1.msra.mxu0 0.0
    %293 = vmatprep.subr.mxu0 0.0
    %294 = vmatpush1.msra.mxu0 0.0
    %295 = vmatprep.subr.mxu0 0.0
    %296 = vmatpush1.msra.mxu0 0.0
    %297 = vmatprep.mubr.f32.mxu0 0.0
    %298 = vmatmul.mubr.f32.gmra.mrb[0].mxu0 0.0
    %v299 = vpop.f32.mrb[0].mxu0
    %v300 = vadd.f32 0.0, %v299
    %v301 = vpop.f32.mrb[0].mxu0
    %v302 = vadd.f32 0.0, %v301
    %303 = vdwg.mxu0
    %v304 = vadd.f32 %v94, %v229
    %v305 = vadd.f32 %v95, %v231
    %v306 = vadd.f32 %v96, %v300
    %v307 = vadd.f32 %v97, %v302
    %v308 = vxor.u32 %v304, 2147483648
    %v309 = vxor.u32 %v305, 2147483648
    %v310 = vxor.u32 %v306, 2147483648
    %v311 = vmul.f32 %v308, 1.442695
    %v312 = vpow.pop %v311
    %v313 = vmul.f32 %v309, 1.442695
    %v314 = vpow.pop %v313
    %v315 = vmul.f32 %v310, 1.442695
    %v316 = vpow.pop %v315
    %v317 = vadd.f32 %v312, 1.0
    %v318 = vadd.f32 %v314, 1.0
    %v319 = vadd.f32 %v316, 1.0
    %v320 = vrcp.pop %v317
    %v321 = vmul.f32 1.0, %v320
    %v322 = vrcp.pop %v318
    %v323 = vmul.f32 1.0, %v322
    %v324 = vrcp.pop %v319
    %v325 = vmul.f32 1.0, %v324
    %v326 = vtanh.pop %v307
    %v327 = vmul.f32 %v323, 0.0
    %v328 = vmul.f32 %v321, %v326
    %v329 = vadd.f32 %v327, %v328
    %v330 = vtanh.pop %v329
    %v331 = vmul.f32 %v325, %v330
    %332 = vmatprep.subr.mxu0 %v99
    %333 = vmatpush1.msra.mxu0 %v98
    %334 = vmatprep.subr.mxu0 %v103
    %335 = vmatpush1.msra.mxu0 %v102
    %336 = vmatprep.subr.mxu0 %v107
    %337 = vmatpush1.msra.mxu0 %v106
    %338 = vmatprep.subr.mxu0 %v111
    %339 = vmatpush1.msra.mxu0 %v110
    %340 = vmatprep.subr.mxu0 %v115
    %341 = vmatpush1.msra.mxu0 %v114
    %342 = vmatprep.subr.mxu0 %v119
    %343 = vmatpush1.msra.mxu0 %v118
    %344 = vmatprep.subr.mxu0 %v123
    %345 = vmatpush1.msra.mxu0 %v122
    %346 = vmatprep.subr.mxu0 %v127
    %347 = vmatpush1.msra.mxu0 %v126
    %348 = vmatprep.subr.mxu0 %v131
    %349 = vmatpush1.msra.mxu0 %v130
    %350 = vmatprep.subr.mxu0 %v135
    %351 = vmatpush1.msra.mxu0 %v134
    %352 = vmatprep.subr.mxu0 %v139
    %353 = vmatpush1.msra.mxu0 %v138
    %354 = vmatprep.subr.mxu0 %v143
    %355 = vmatpush1.msra.mxu0 %v142
    %356 = vmatprep.subr.mxu0 %v147
    %357 = vmatpush1.msra.mxu0 %v146
    %358 = vmatprep.subr.mxu0 %v151
    %359 = vmatpush1.msra.mxu0 %v150
    %360 = vmatprep.subr.mxu0 %v155
    %361 = vmatpush1.msra.mxu0 %v154
    %362 = vmatprep.subr.mxu0 %v159
    %363 = vmatpush1.msra.mxu0 %v158
    %364 = vmatprep.subr.mxu0 0.0
    %365 = vmatpush1.msra.mxu0 0.0
    %366 = vmatprep.subr.mxu0 0.0
    %367 = vmatpush1.msra.mxu0 0.0
    %368 = vmatprep.subr.mxu0 0.0
    %369 = vmatpush1.msra.mxu0 0.0
    %370 = vmatprep.subr.mxu0 0.0
    %371 = vmatpush1.msra.mxu0 0.0
    %372 = vmatprep.subr.mxu0 0.0
    %373 = vmatpush1.msra.mxu0 0.0
    %374 = vmatprep.subr.mxu0 0.0
    %375 = vmatpush1.msra.mxu0 0.0
    %376 = vmatprep.subr.mxu0 0.0
    %377 = vmatpush1.msra.mxu0 0.0
    %378 = vmatprep.subr.mxu0 0.0
    %379 = vmatpush1.msra.mxu0 0.0
    %380 = vmatprep.subr.mxu0 0.0
    %381 = vmatpush1.msra.mxu0 0.0
    %382 = vmatprep.subr.mxu0 0.0
    %383 = vmatpush1.msra.mxu0 0.0
    %384 = vmatprep.subr.mxu0 0.0
    %385 = vmatpush1.msra.mxu0 0.0
    %386 = vmatprep.subr.mxu0 0.0
    %387 = vmatpush1.msra.mxu0 0.0
    %388 = vmatprep.subr.mxu0 0.0
    %389 = vmatpush1.msra.mxu0 0.0
    %390 = vmatprep.subr.mxu0 0.0
    %391 = vmatpush1.msra.mxu0 0.0
    %392 = vmatprep.subr.mxu0 0.0
    %393 = vmatpush1.msra.mxu0 0.0
    %394 = vmatprep.subr.mxu0 0.0
    %395 = vmatpush1.msra.mxu0 0.0
    %396 = vmatprep.mubr.f32.mxu0 0.0
    %397 = vmatmul.mubr.f32.gmra.mrb[0].mxu0 %v331
    %v398 = vpop.f32.mrb[0].mxu0
    %v399 = vadd.f32 0.0, %v398
    %v400 = vpop.f32.mrb[0].mxu0
    %v401 = vadd.f32 0.0, %v400
    %402 = vdwg.mxu0
    %403 = vmatprep.subr.mxu0 %v101
    %404 = vmatpush1.msra.mxu0 %v100
    %405 = vmatprep.subr.mxu0 %v105
    %406 = vmatpush1.msra.mxu0 %v104
    %407 = vmatprep.subr.mxu0 %v109
    %408 = vmatpush1.msra.mxu0 %v108
    %409 = vmatprep.subr.mxu0 %v113
    %410 = vmatpush1.msra.mxu0 %v112
    %411 = vmatprep.subr.mxu0 %v117
    %412 = vmatpush1.msra.mxu0 %v116
    %413 = vmatprep.subr.mxu0 %v121
    %414 = vmatpush1.msra.mxu0 %v120
    %415 = vmatprep.subr.mxu0 %v125
    %416 = vmatpush1.msra.mxu0 %v124
    %417 = vmatprep.subr.mxu0 %v129
    %418 = vmatpush1.msra.mxu0 %v128
    %419 = vmatprep.subr.mxu0 %v133
    %420 = vmatpush1.msra.mxu0 %v132
    %421 = vmatprep.subr.mxu0 %v137
    %422 = vmatpush1.msra.mxu0 %v136
    %423 = vmatprep.subr.mxu0 %v141
    %424 = vmatpush1.msra.mxu0 %v140
    %425 = vmatprep.subr.mxu0 %v145
    %426 = vmatpush1.msra.mxu0 %v144
    %427 = vmatprep.subr.mxu0 %v149
    %428 = vmatpush1.msra.mxu0 %v148
    %429 = vmatprep.subr.mxu0 %v153
    %430 = vmatpush1.msra.mxu0 %v152
    %431 = vmatprep.subr.mxu0 %v157
    %432 = vmatpush1.msra.mxu0 %v156
    %433 = vmatprep.subr.mxu0 %v161
    %434 = vmatpush1.msra.mxu0 %v160
    %435 = vmatprep.subr.mxu0 0.0
    %436 = vmatpush1.msra.mxu0 0.0
    %437 = vmatprep.subr.mxu0 0.0
    %438 = vmatpush1.msra.mxu0 0.0
    %439 = vmatprep.subr.mxu0 0.0
    %440 = vmatpush1.msra.mxu0 0.0
    %441 = vmatprep.subr.mxu0 0.0
    %442 = vmatpush1.msra.mxu0 0.0
    %443 = vmatprep.subr.mxu0 0.0
    %444 = vmatpush1.msra.mxu0 0.0
    %445 = vmatprep.subr.mxu0 0.0
    %446 = vmatpush1.msra.mxu0 0.0
    %447 = vmatprep.subr.mxu0 0.0
    %448 = vmatpush1.msra.mxu0 0.0
    %449 = vmatprep.subr.mxu0 0.0
    %450 = vmatpush1.msra.mxu0 0.0
    %451 = vmatprep.subr.mxu0 0.0
    %452 = vmatpush1.msra.mxu0 0.0
    %453 = vmatprep.subr.mxu0 0.0
    %454 = vmatpush1.msra.mxu0 0.0
    %455 = vmatprep.subr.mxu0 0.0
    %456 = vmatpush1.msra.mxu0 0.0
    %457 = vmatprep.subr.mxu0 0.0
    %458 = vmatpush1.msra.mxu0 0.0
    %459 = vmatprep.subr.mxu0 0.0
    %460 = vmatpush1.msra.mxu0 0.0
    %461 = vmatprep.subr.mxu0 0.0
    %462 = vmatpush1.msra.mxu0 0.0
    %463 = vmatprep.subr.mxu0 0.0
    %464 = vmatpush1.msra.mxu0 0.0
    %465 = vmatprep.subr.mxu0 0.0
    %466 = vmatpush1.msra.mxu0 0.0
    %467 = vmatprep.mubr.f32.mxu0 0.0
    %468 = vmatmul.mubr.f32.gmra.mrb[0].mxu0 %v331
    %v469 = vpop.f32.mrb[0].mxu0
    %v470 = vadd.f32 0.0, %v469
    %v471 = vpop.f32.mrb[0].mxu0
    %v472 = vadd.f32 0.0, %v471
    %473 = vdwg.mxu0
    %v478 = vrot.slane %v399, 7
    %v479 = vrot.slane %v401, 7
    %v480 = vrot.slane %v470, 7
    %v481 = vrot.slane %v472, 7
    %v486 = vadd.f32 %v94, %v478
    %v487 = vadd.f32 %v95, %v479
    %v488 = vadd.f32 %v96, %v480
    %v489 = vadd.f32 %v97, %v481
    %v490 = vxor.u32 %v486, 2147483648
    %v491 = vxor.u32 %v487, 2147483648
    %v492 = vxor.u32 %v488, 2147483648
    %v493 = vmul.f32 %v490, 1.442695
    %v494 = vpow.pop %v493
    %v495 = vmul.f32 %v491, 1.442695
    %v496 = vpow.pop %v495
    %v497 = vmul.f32 %v492, 1.442695
    %v498 = vpow.pop %v497
    %v499 = vadd.f32 %v494, 1.0
    %v500 = vadd.f32 %v496, 1.0
    %v501 = vadd.f32 %v498, 1.0
    %v502 = vrcp.pop %v499
    %v503 = vmul.f32 1.0, %v502
    %v504 = vrcp.pop %v500
    %v505 = vmul.f32 1.0, %v504
    %v506 = vrcp.pop %v501
    %v507 = vmul.f32 1.0, %v506
    %v508 = vtanh.pop %v489
    %v510 = vrot.slane %v329, 7
    %v512 = vmul.f32 %v505, %v510
    %v513 = vmul.f32 %v503, %v508
    %v514 = vadd.f32 %v512, %v513
    %v515 = vtanh.pop %v514
    %v516 = vmul.f32 %v507, %v515
    %v518 = vrot.slane %v516, 1
    %520 = vmatprep.subr.mxu0 %v99
    %521 = vmatpush1.msra.mxu0 %v98
    %522 = vmatprep.subr.mxu0 %v103
    %523 = vmatpush1.msra.mxu0 %v102
    %524 = vmatprep.subr.mxu0 %v107
    %525 = vmatpush1.msra.mxu0 %v106
    %526 = vmatprep.subr.mxu0 %v111
    %527 = vmatpush1.msra.mxu0 %v110
    %528 = vmatprep.subr.mxu0 %v115
    %529 = vmatpush1.msra.mxu0 %v114
    %530 = vmatprep.subr.mxu0 %v119
    %531 = vmatpush1.msra.mxu0 %v118
    %532 = vmatprep.subr.mxu0 %v123
    %533 = vmatpush1.msra.mxu0 %v122
    %534 = vmatprep.subr.mxu0 %v127
    %535 = vmatpush1.msra.mxu0 %v126
    %536 = vmatprep.subr.mxu0 %v131
    %537 = vmatpush1.msra.mxu0 %v130
    %538 = vmatprep.subr.mxu0 %v135
    %539 = vmatpush1.msra.mxu0 %v134
    %540 = vmatprep.subr.mxu0 %v139
    %541 = vmatpush1.msra.mxu0 %v138
    %542 = vmatprep.subr.mxu0 %v143
    %543 = vmatpush1.msra.mxu0 %v142
    %544 = vmatprep.subr.mxu0 %v147
    %545 = vmatpush1.msra.mxu0 %v146
    %546 = vmatprep.subr.mxu0 %v151
    %547 = vmatpush1.msra.mxu0 %v150
    %548 = vmatprep.subr.mxu0 %v155
    %549 = vmatpush1.msra.mxu0 %v154
    %550 = vmatprep.subr.mxu0 %v159
    %551 = vmatpush1.msra.mxu0 %v158
    %552 = vmatprep.subr.mxu0 0.0
    %553 = vmatpush1.msra.mxu0 0.0
    %554 = vmatprep.subr.mxu0 0.0
    %555 = vmatpush1.msra.mxu0 0.0
    %556 = vmatprep.subr.mxu0 0.0
    %557 = vmatpush1.msra.mxu0 0.0
    %558 = vmatprep.subr.mxu0 0.0
    %559 = vmatpush1.msra.mxu0 0.0
    %560 = vmatprep.subr.mxu0 0.0
    %561 = vmatpush1.msra.mxu0 0.0
    %562 = vmatprep.subr.mxu0 0.0
    %563 = vmatpush1.msra.mxu0 0.0
    %564 = vmatprep.subr.mxu0 0.0
    %565 = vmatpush1.msra.mxu0 0.0
    %566 = vmatprep.subr.mxu0 0.0
    %567 = vmatpush1.msra.mxu0 0.0
    %568 = vmatprep.subr.mxu0 0.0
    %569 = vmatpush1.msra.mxu0 0.0
    %570 = vmatprep.subr.mxu0 0.0
    %571 = vmatpush1.msra.mxu0 0.0
    %572 = vmatprep.subr.mxu0 0.0
    %573 = vmatpush1.msra.mxu0 0.0
    %574 = vmatprep.subr.mxu0 0.0
    %575 = vmatpush1.msra.mxu0 0.0
    %576 = vmatprep.subr.mxu0 0.0
    %577 = vmatpush1.msra.mxu0 0.0
    %578 = vmatprep.subr.mxu0 0.0
    %579 = vmatpush1.msra.mxu0 0.0
    %580 = vmatprep.subr.mxu0 0.0
    %581 = vmatpush1.msra.mxu0 0.0
    %582 = vmatprep.subr.mxu0 0.0
    %583 = vmatpush1.msra.mxu0 0.0
    %584 = vmatprep.mubr.f32.mxu0 0.0
    %585 = vmatmul.mubr.f32.gmra.mrb[0].mxu0 %v518
    %v586 = vpop.f32.mrb[0].mxu0
    %v587 = vadd.f32 0.0, %v586
    %v588 = vpop.f32.mrb[0].mxu0
    %v589 = vadd.f32 0.0, %v588
    %590 = vdwg.mxu0
    %591 = vmatprep.subr.mxu0 %v101
    %592 = vmatpush1.msra.mxu0 %v100
    %593 = vmatprep.subr.mxu0 %v105
    %594 = vmatpush1.msra.mxu0 %v104
    %595 = vmatprep.subr.mxu0 %v109
    %596 = vmatpush1.msra.mxu0 %v108
    %597 = vmatprep.subr.mxu0 %v113
    %598 = vmatpush1.msra.mxu0 %v112
    %599 = vmatprep.subr.mxu0 %v117
    %600 = vmatpush1.msra.mxu0 %v116
    %601 = vmatprep.subr.mxu0 %v121
    %602 = vmatpush1.msra.mxu0 %v120
    %603 = vmatprep.subr.mxu0 %v125
    %604 = vmatpush1.msra.mxu0 %v124
    %605 = vmatprep.subr.mxu0 %v129
    %606 = vmatpush1.msra.mxu0 %v128
    %607 = vmatprep.subr.mxu0 %v133
    %608 = vmatpush1.msra.mxu0 %v132
    %609 = vmatprep.subr.mxu0 %v137
    %610 = vmatpush1.msra.mxu0 %v136
    %611 = vmatprep.subr.mxu0 %v141
    %612 = vmatpush1.msra.mxu0 %v140
    %613 = vmatprep.subr.mxu0 %v145
    %614 = vmatpush1.msra.mxu0 %v144
    %615 = vmatprep.subr.mxu0 %v149
    %616 = vmatpush1.msra.mxu0 %v148
    %617 = vmatprep.subr.mxu0 %v153
    %618 = vmatpush1.msra.mxu0 %v152
    %619 = vmatprep.subr.mxu0 %v157
    %620 = vmatpush1.msra.mxu0 %v156
    %621 = vmatprep.subr.mxu0 %v161
    %622 = vmatpush1.msra.mxu0 %v160
    %623 = vmatprep.subr.mxu0 0.0
    %624 = vmatpush1.msra.mxu0 0.0
    %625 = vmatprep.subr.mxu0 0.0
    %626 = vmatpush1.msra.mxu0 0.0
    %627 = vmatprep.subr.mxu0 0.0
    %628 = vmatpush1.msra.mxu0 0.0
    %629 = vmatprep.subr.mxu0 0.0
    %630 = vmatpush1.msra.mxu0 0.0
    %631 = vmatprep.subr.mxu0 0.0
    %632 = vmatpush1.msra.mxu0 0.0
    %633 = vmatprep.subr.mxu0 0.0
    %634 = vmatpush1.msra.mxu0 0.0
    %635 = vmatprep.subr.mxu0 0.0
    %636 = vmatpush1.msra.mxu0 0.0
    %637 = vmatprep.subr.mxu0 0.0
    %638 = vmatpush1.msra.mxu0 0.0
    %639 = vmatprep.subr.mxu0 0.0
    %640 = vmatpush1.msra.mxu0 0.0
    %641 = vmatprep.subr.mxu0 0.0
    %642 = vmatpush1.msra.mxu0 0.0
    %643 = vmatprep.subr.mxu0 0.0
    %644 = vmatpush1.msra.mxu0 0.0
    %645 = vmatprep.subr.mxu0 0.0
    %646 = vmatpush1.msra.mxu0 0.0
    %647 = vmatprep.subr.mxu0 0.0
    %648 = vmatpush1.msra.mxu0 0.0
    %649 = vmatprep.subr.mxu0 0.0
    %650 = vmatpush1.msra.mxu0 0.0
    %651 = vmatprep.subr.mxu0 0.0
    %652 = vmatpush1.msra.mxu0 0.0
    %653 = vmatprep.subr.mxu0 0.0
    %654 = vmatpush1.msra.mxu0 0.0
    %655 = vmatprep.mubr.f32.mxu0 0.0
    %656 = vmatmul.mubr.f32.gmra.mrb[0].mxu0 %v518
    %v657 = vpop.f32.mrb[0].mxu0
    %v658 = vadd.f32 0.0, %v657
    %v659 = vpop.f32.mrb[0].mxu0
    %v660 = vadd.f32 0.0, %v659
    %661 = vdwg.mxu0
    %v666 = vrot.slane %v587, 6
    %v667 = vrot.slane %v589, 6
    %v668 = vrot.slane %v658, 6
    %v669 = vrot.slane %v660, 6
    %v674 = vadd.f32 %v94, %v666
    %v675 = vadd.f32 %v95, %v667
    %v676 = vadd.f32 %v96, %v668
    %v677 = vadd.f32 %v97, %v669
    %v678 = vxor.u32 %v674, 2147483648
    %v679 = vxor.u32 %v675, 2147483648
    %v680 = vxor.u32 %v676, 2147483648
    %v681 = vmul.f32 %v678, 1.442695
    %v682 = vpow.pop %v681
    %v683 = vmul.f32 %v679, 1.442695
    %v684 = vpow.pop %v683
    %v685 = vmul.f32 %v680, 1.442695
    %v686 = vpow.pop %v685
    %v687 = vadd.f32 %v682, 1.0
    %v688 = vadd.f32 %v684, 1.0
    %v689 = vadd.f32 %v686, 1.0
    %v690 = vrcp.pop %v687
    %v691 = vmul.f32 1.0, %v690
    %v692 = vrcp.pop %v688
    %v693 = vmul.f32 1.0, %v692
    %v694 = vrcp.pop %v689
    %v695 = vmul.f32 1.0, %v694
    %v696 = vtanh.pop %v677
    %v698 = vrot.slane %v514, 7
    %v700 = vmul.f32 %v693, %v698
    %v701 = vmul.f32 %v691, %v696
    %v702 = vadd.f32 %v700, %v701
    %v703 = vtanh.pop %v702
    %v704 = vmul.f32 %v695, %v703
    %v706 = vrot.slane %v704, 2
    %708 = vmatprep.subr.mxu0 %v99
    %709 = vmatpush1.msra.mxu0 %v98
    %710 = vmatprep.subr.mxu0 %v103
    %711 = vmatpush1.msra.mxu0 %v102
    %712 = vmatprep.subr.mxu0 %v107
    %713 = vmatpush1.msra.mxu0 %v106
    %714 = vmatprep.subr.mxu0 %v111
    %715 = vmatpush1.msra.mxu0 %v110
    %716 = vmatprep.subr.mxu0 %v115
    %717 = vmatpush1.msra.mxu0 %v114
    %718 = vmatprep.subr.mxu0 %v119
    %719 = vmatpush1.msra.mxu0 %v118
    %720 = vmatprep.subr.mxu0 %v123
    %721 = vmatpush1.msra.mxu0 %v122
    %722 = vmatprep.subr.mxu0 %v127
    %723 = vmatpush1.msra.mxu0 %v126
    %724 = vmatprep.subr.mxu0 %v131
    %725 = vmatpush1.msra.mxu0 %v130
    %726 = vmatprep.subr.mxu0 %v135
    %727 = vmatpush1.msra.mxu0 %v134
    %728 = vmatprep.subr.mxu0 %v139
    %729 = vmatpush1.msra.mxu0 %v138
    %730 = vmatprep.subr.mxu0 %v143
    %731 = vmatpush1.msra.mxu0 %v142
    %732 = vmatprep.subr.mxu0 %v147
    %733 = vmatpush1.msra.mxu0 %v146
    %734 = vmatprep.subr.mxu0 %v151
    %735 = vmatpush1.msra.mxu0 %v150
    %736 = vmatprep.subr.mxu0 %v155
    %737 = vmatpush1.msra.mxu0 %v154
    %738 = vmatprep.subr.mxu0 %v159
    %739 = vmatpush1.msra.mxu0 %v158
    %740 = vmatprep.subr.mxu0 0.0
    %741 = vmatpush1.msra.mxu0 0.0
    %742 = vmatprep.subr.mxu0 0.0
    %743 = vmatpush1.msra.mxu0 0.0
    %744 = vmatprep.subr.mxu0 0.0
    %745 = vmatpush1.msra.mxu0 0.0
    %746 = vmatprep.subr.mxu0 0.0
    %747 = vmatpush1.msra.mxu0 0.0
    %748 = vmatprep.subr.mxu0 0.0
    %749 = vmatpush1.msra.mxu0 0.0
    %750 = vmatprep.subr.mxu0 0.0
    %751 = vmatpush1.msra.mxu0 0.0
    %752 = vmatprep.subr.mxu0 0.0
    %753 = vmatpush1.msra.mxu0 0.0
    %754 = vmatprep.subr.mxu0 0.0
    %755 = vmatpush1.msra.mxu0 0.0
    %756 = vmatprep.subr.mxu0 0.0
    %757 = vmatpush1.msra.mxu0 0.0
    %758 = vmatprep.subr.mxu0 0.0
    %759 = vmatpush1.msra.mxu0 0.0
    %760 = vmatprep.subr.mxu0 0.0
    %761 = vmatpush1.msra.mxu0 0.0
    %762 = vmatprep.subr.mxu0 0.0
    %763 = vmatpush1.msra.mxu0 0.0
    %764 = vmatprep.subr.mxu0 0.0
    %765 = vmatpush1.msra.mxu0 0.0
    %766 = vmatprep.subr.mxu0 0.0
    %767 = vmatpush1.msra.mxu0 0.0
    %768 = vmatprep.subr.mxu0 0.0
    %769 = vmatpush1.msra.mxu0 0.0
    %770 = vmatprep.subr.mxu0 0.0
    %771 = vmatpush1.msra.mxu0 0.0
    %772 = vmatprep.mubr.f32.mxu0 0.0
    %773 = vmatmul.mubr.f32.gmra.mrb[0].mxu0 %v706
    %v774 = vpop.f32.mrb[0].mxu0
    %v775 = vadd.f32 0.0, %v774
    %v776 = vpop.f32.mrb[0].mxu0
    %v777 = vadd.f32 0.0, %v776
    %778 = vdwg.mxu0
    %779 = vmatprep.subr.mxu0 %v101
    %780 = vmatpush1.msra.mxu0 %v100
    %781 = vmatprep.subr.mxu0 %v105
    %782 = vmatpush1.msra.mxu0 %v104
    %783 = vmatprep.subr.mxu0 %v109
    %784 = vmatpush1.msra.mxu0 %v108
    %785 = vmatprep.subr.mxu0 %v113
    %786 = vmatpush1.msra.mxu0 %v112
    %787 = vmatprep.subr.mxu0 %v117
    %788 = vmatpush1.msra.mxu0 %v116
    %789 = vmatprep.subr.mxu0 %v121
    %790 = vmatpush1.msra.mxu0 %v120
    %791 = vmatprep.subr.mxu0 %v125
    %792 = vmatpush1.msra.mxu0 %v124
    %793 = vmatprep.subr.mxu0 %v129
    %794 = vmatpush1.msra.mxu0 %v128
    %795 = vmatprep.subr.mxu0 %v133
    %796 = vmatpush1.msra.mxu0 %v132
    %797 = vmatprep.subr.mxu0 %v137
    %798 = vmatpush1.msra.mxu0 %v136
    %799 = vmatprep.subr.mxu0 %v141
    %800 = vmatpush1.msra.mxu0 %v140
    %801 = vmatprep.subr.mxu0 %v145
    %802 = vmatpush1.msra.mxu0 %v144
    %803 = vmatprep.subr.mxu0 %v149
    %804 = vmatpush1.msra.mxu0 %v148
    %805 = vmatprep.subr.mxu0 %v153
    %806 = vmatpush1.msra.mxu0 %v152
    %807 = vmatprep.subr.mxu0 %v157
    %808 = vmatpush1.msra.mxu0 %v156
    %809 = vmatprep.subr.mxu0 %v161
    %810 = vmatpush1.msra.mxu0 %v160
    %811 = vmatprep.subr.mxu0 0.0
    %812 = vmatpush1.msra.mxu0 0.0
    %813 = vmatprep.subr.mxu0 0.0
    %814 = vmatpush1.msra.mxu0 0.0
    %815 = vmatprep.subr.mxu0 0.0
    %816 = vmatpush1.msra.mxu0 0.0
    %817 = vmatprep.subr.mxu0 0.0
    %818 = vmatpush1.msra.mxu0 0.0
    %819 = vmatprep.subr.mxu0 0.0
    %820 = vmatpush1.msra.mxu0 0.0
    %821 = vmatprep.subr.mxu0 0.0
    %822 = vmatpush1.msra.mxu0 0.0
    %823 = vmatprep.subr.mxu0 0.0
    %824 = vmatpush1.msra.mxu0 0.0
    %825 = vmatprep.subr.mxu0 0.0
    %826 = vmatpush1.msra.mxu0 0.0
    %827 = vmatprep.subr.mxu0 0.0
    %828 = vmatpush1.msra.mxu0 0.0
    %829 = vmatprep.subr.mxu0 0.0
    %830 = vmatpush1.msra.mxu0 0.0
    %831 = vmatprep.subr.mxu0 0.0
    %832 = vmatpush1.msra.mxu0 0.0
    %833 = vmatprep.subr.mxu0 0.0
    %834 = vmatpush1.msra.mxu0 0.0
    %835 = vmatprep.subr.mxu0 0.0
    %836 = vmatpush1.msra.mxu0 0.0
    %837 = vmatprep.subr.mxu0 0.0
    %838 = vmatpush1.msra.mxu0 0.0
    %839 = vmatprep.subr.mxu0 0.0
    %840 = vmatpush1.msra.mxu0 0.0
    %841 = vmatprep.subr.mxu0 0.0
    %842 = vmatpush1.msra.mxu0 0.0
    %843 = vmatprep.mubr.f32.mxu0 0.0
    %844 = vmatmul.mubr.f32.gmra.mrb[0].mxu0 %v706
    %v845 = vpop.f32.mrb[0].mxu0
    %v846 = vadd.f32 0.0, %v845
    %v847 = vpop.f32.mrb[0].mxu0
    %v848 = vadd.f32 0.0, %v847
    %849 = vdwg.mxu0
    %v854 = vrot.slane %v775, 5
    %v855 = vrot.slane %v777, 5
    %v856 = vrot.slane %v846, 5
    %v857 = vrot.slane %v848, 5
    %v862 = vadd.f32 %v94, %v854
    %v863 = vadd.f32 %v95, %v855
    %v864 = vadd.f32 %v96, %v856
    %v865 = vadd.f32 %v97, %v857
    %v866 = vxor.u32 %v862, 2147483648
    %v867 = vxor.u32 %v863, 2147483648
    %v868 = vxor.u32 %v864, 2147483648
    %v869 = vmul.f32 %v866, 1.442695
    %v870 = vpow.pop %v869
    %v871 = vmul.f32 %v867, 1.442695
    %v872 = vpow.pop %v871
    %v873 = vmul.f32 %v868, 1.442695
    %v874 = vpow.pop %v873
    %v875 = vadd.f32 %v870, 1.0
    %v876 = vadd.f32 %v872, 1.0
    %v877 = vadd.f32 %v874, 1.0
    %v878 = vrcp.pop %v875
    %v879 = vmul.f32 1.0, %v878
    %v880 = vrcp.pop %v876
    %v881 = vmul.f32 1.0, %v880
    %v882 = vrcp.pop %v877
    %v883 = vmul.f32 1.0, %v882
    %v884 = vtanh.pop %v865
    %v886 = vrot.slane %v702, 7
    %v888 = vmul.f32 %v881, %v886
    %v889 = vmul.f32 %v879, %v884
    %v890 = vadd.f32 %v888, %v889
    %v891 = vtanh.pop %v890
    %v892 = vmul.f32 %v883, %v891
    %v894 = vrot.slane %v892, 3
    %896 = vmatprep.subr.mxu0 %v99
    %897 = vmatpush1.msra.mxu0 %v98
    %898 = vmatprep.subr.mxu0 %v103
    %899 = vmatpush1.msra.mxu0 %v102
    %900 = vmatprep.subr.mxu0 %v107
    %901 = vmatpush1.msra.mxu0 %v106
    %902 = vmatprep.subr.mxu0 %v111
    %903 = vmatpush1.msra.mxu0 %v110
    %904 = vmatprep.subr.mxu0 %v115
    %905 = vmatpush1.msra.mxu0 %v114
    %906 = vmatprep.subr.mxu0 %v119
    %907 = vmatpush1.msra.mxu0 %v118
    %908 = vmatprep.subr.mxu0 %v123
    %909 = vmatpush1.msra.mxu0 %v122
    %910 = vmatprep.subr.mxu0 %v127
    %911 = vmatpush1.msra.mxu0 %v126
    %912 = vmatprep.subr.mxu0 %v131
    %913 = vmatpush1.msra.mxu0 %v130
    %914 = vmatprep.subr.mxu0 %v135
    %915 = vmatpush1.msra.mxu0 %v134
    %916 = vmatprep.subr.mxu0 %v139
    %917 = vmatpush1.msra.mxu0 %v138
    %918 = vmatprep.subr.mxu0 %v143
    %919 = vmatpush1.msra.mxu0 %v142
    %920 = vmatprep.subr.mxu0 %v147
    %921 = vmatpush1.msra.mxu0 %v146
    %922 = vmatprep.subr.mxu0 %v151
    %923 = vmatpush1.msra.mxu0 %v150
    %924 = vmatprep.subr.mxu0 %v155
    %925 = vmatpush1.msra.mxu0 %v154
    %926 = vmatprep.subr.mxu0 %v159
    %927 = vmatpush1.msra.mxu0 %v158
    %928 = vmatprep.subr.mxu0 0.0
    %929 = vmatpush1.msra.mxu0 0.0
    %930 = vmatprep.subr.mxu0 0.0
    %931 = vmatpush1.msra.mxu0 0.0
    %932 = vmatprep.subr.mxu0 0.0
    %933 = vmatpush1.msra.mxu0 0.0
    %934 = vmatprep.subr.mxu0 0.0
    %935 = vmatpush1.msra.mxu0 0.0
    %936 = vmatprep.subr.mxu0 0.0
    %937 = vmatpush1.msra.mxu0 0.0
    %938 = vmatprep.subr.mxu0 0.0
    %939 = vmatpush1.msra.mxu0 0.0
    %940 = vmatprep.subr.mxu0 0.0
    %941 = vmatpush1.msra.mxu0 0.0
    %942 = vmatprep.subr.mxu0 0.0
    %943 = vmatpush1.msra.mxu0 0.0
    %944 = vmatprep.subr.mxu0 0.0
    %945 = vmatpush1.msra.mxu0 0.0
    %946 = vmatprep.subr.mxu0 0.0
    %947 = vmatpush1.msra.mxu0 0.0
    %948 = vmatprep.subr.mxu0 0.0
    %949 = vmatpush1.msra.mxu0 0.0
    %950 = vmatprep.subr.mxu0 0.0
    %951 = vmatpush1.msra.mxu0 0.0
    %952 = vmatprep.subr.mxu0 0.0
    %953 = vmatpush1.msra.mxu0 0.0
    %954 = vmatprep.subr.mxu0 0.0
    %955 = vmatpush1.msra.mxu0 0.0
    %956 = vmatprep.subr.mxu0 0.0
    %957 = vmatpush1.msra.mxu0 0.0
    %958 = vmatprep.subr.mxu0 0.0
    %959 = vmatpush1.msra.mxu0 0.0
    %960 = vmatprep.mubr.f32.mxu0 0.0
    %961 = vmatmul.mubr.f32.gmra.mrb[0].mxu0 %v894
    %v962 = vpop.f32.mrb[0].mxu0
    %v963 = vadd.f32 0.0, %v962
    %v964 = vpop.f32.mrb[0].mxu0
    %v965 = vadd.f32 0.0, %v964
    %966 = vdwg.mxu0
    %967 = vmatprep.subr.mxu0 %v101
    %968 = vmatpush1.msra.mxu0 %v100
    %969 = vmatprep.subr.mxu0 %v105
    %970 = vmatpush1.msra.mxu0 %v104
    %971 = vmatprep.subr.mxu0 %v109
    %972 = vmatpush1.msra.mxu0 %v108
    %973 = vmatprep.subr.mxu0 %v113
    %974 = vmatpush1.msra.mxu0 %v112
    %975 = vmatprep.subr.mxu0 %v117
    %976 = vmatpush1.msra.mxu0 %v116
    %977 = vmatprep.subr.mxu0 %v121
    %978 = vmatpush1.msra.mxu0 %v120
    %979 = vmatprep.subr.mxu0 %v125
    %980 = vmatpush1.msra.mxu0 %v124
    %981 = vmatprep.subr.mxu0 %v129
    %982 = vmatpush1.msra.mxu0 %v128
    %983 = vmatprep.subr.mxu0 %v133
    %984 = vmatpush1.msra.mxu0 %v132
    %985 = vmatprep.subr.mxu0 %v137
    %986 = vmatpush1.msra.mxu0 %v136
    %987 = vmatprep.subr.mxu0 %v141
    %988 = vmatpush1.msra.mxu0 %v140
    %989 = vmatprep.subr.mxu0 %v145
    %990 = vmatpush1.msra.mxu0 %v144
    %991 = vmatprep.subr.mxu0 %v149
    %992 = vmatpush1.msra.mxu0 %v148
    %993 = vmatprep.subr.mxu0 %v153
    %994 = vmatpush1.msra.mxu0 %v152
    %995 = vmatprep.subr.mxu0 %v157
    %996 = vmatpush1.msra.mxu0 %v156
    %997 = vmatprep.subr.mxu0 %v161
    %998 = vmatpush1.msra.mxu0 %v160
    %999 = vmatprep.subr.mxu0 0.0
    %1000 = vmatpush1.msra.mxu0 0.0
    %1001 = vmatprep.subr.mxu0 0.0
    %1002 = vmatpush1.msra.mxu0 0.0
    %1003 = vmatprep.subr.mxu0 0.0
    %1004 = vmatpush1.msra.mxu0 0.0
    %1005 = vmatprep.subr.mxu0 0.0
    %1006 = vmatpush1.msra.mxu0 0.0
    %1007 = vmatprep.subr.mxu0 0.0
    %1008 = vmatpush1.msra.mxu0 0.0
    %1009 = vmatprep.subr.mxu0 0.0
    %1010 = vmatpush1.msra.mxu0 0.0
    %1011 = vmatprep.subr.mxu0 0.0
    %1012 = vmatpush1.msra.mxu0 0.0
    %1013 = vmatprep.subr.mxu0 0.0
    %1014 = vmatpush1.msra.mxu0 0.0
    %1015 = vmatprep.subr.mxu0 0.0
    %1016 = vmatpush1.msra.mxu0 0.0
    %1017 = vmatprep.subr.mxu0 0.0
    %1018 = vmatpush1.msra.mxu0 0.0
    %1019 = vmatprep.subr.mxu0 0.0
    %1020 = vmatpush1.msra.mxu0 0.0
    %1021 = vmatprep.subr.mxu0 0.0
    %1022 = vmatpush1.msra.mxu0 0.0
    %1023 = vmatprep.subr.mxu0 0.0
    %1024 = vmatpush1.msra.mxu0 0.0
    %1025 = vmatprep.subr.mxu0 0.0
    %1026 = vmatpush1.msra.mxu0 0.0
    %1027 = vmatprep.subr.mxu0 0.0
    %1028 = vmatpush1.msra.mxu0 0.0
    %1029 = vmatprep.subr.mxu0 0.0
    %1030 = vmatpush1.msra.mxu0 0.0
    %1031 = vmatprep.mubr.f32.mxu0 0.0
    %1032 = vmatmul.mubr.f32.gmra.mrb[0].mxu0 %v894
    %v1033 = vpop.f32.mrb[0].mxu0
    %v1034 = vadd.f32 0.0, %v1033
    %v1035 = vpop.f32.mrb[0].mxu0
    %v1036 = vadd.f32 0.0, %v1035
    %1037 = vdwg.mxu0
    %v1042 = vrot.slane %v963, 4
    %v1043 = vrot.slane %v965, 4
    %v1044 = vrot.slane %v1034, 4
    %v1045 = vrot.slane %v1036, 4
    %v1050 = vadd.f32 %v94, %v1042
    %v1051 = vadd.f32 %v95, %v1043
    %v1052 = vadd.f32 %v96, %v1044
    %v1053 = vadd.f32 %v97, %v1045
    %v1054 = vxor.u32 %v1050, 2147483648
    %v1055 = vxor.u32 %v1051, 2147483648
    %v1056 = vxor.u32 %v1052, 2147483648
    %v1057 = vmul.f32 %v1054, 1.442695
    %v1058 = vpow.pop %v1057
    %v1059 = vmul.f32 %v1055, 1.442695
    %v1060 = vpow.pop %v1059
    %v1061 = vmul.f32 %v1056, 1.442695
    %v1062 = vpow.pop %v1061
    %v1063 = vadd.f32 %v1058, 1.0
    %v1064 = vadd.f32 %v1060, 1.0
    %v1065 = vadd.f32 %v1062, 1.0
    %v1066 = vrcp.pop %v1063
    %v1067 = vmul.f32 1.0, %v1066
    %v1068 = vrcp.pop %v1064
    %v1069 = vmul.f32 1.0, %v1068
    %v1070 = vrcp.pop %v1065
    %v1071 = vmul.f32 1.0, %v1070
    %v1072 = vtanh.pop %v1053
    %v1074 = vrot.slane %v890, 7
    %v1076 = vmul.f32 %v1069, %v1074
    %v1077 = vmul.f32 %v1067, %v1072
    %v1078 = vadd.f32 %v1076, %v1077
    %v1079 = vtanh.pop %v1078
    %v1080 = vmul.f32 %v1071, %v1079
    %v1082 = vrot.slane %v1080, 4
    %1084 = vmatprep.subr.mxu0 %v99
    %1085 = vmatpush1.msra.mxu0 %v98
    %1086 = vmatprep.subr.mxu0 %v103
    %1087 = vmatpush1.msra.mxu0 %v102
    %1088 = vmatprep.subr.mxu0 %v107
    %1089 = vmatpush1.msra.mxu0 %v106
    %1090 = vmatprep.subr.mxu0 %v111
    %1091 = vmatpush1.msra.mxu0 %v110
    %1092 = vmatprep.subr.mxu0 %v115
    %1093 = vmatpush1.msra.mxu0 %v114
    %1094 = vmatprep.subr.mxu0 %v119
    %1095 = vmatpush1.msra.mxu0 %v118
    %1096 = vmatprep.subr.mxu0 %v123
    %1097 = vmatpush1.msra.mxu0 %v122
    %1098 = vmatprep.subr.mxu0 %v127
    %1099 = vmatpush1.msra.mxu0 %v126
    %1100 = vmatprep.subr.mxu0 %v131
    %1101 = vmatpush1.msra.mxu0 %v130
    %1102 = vmatprep.subr.mxu0 %v135
    %1103 = vmatpush1.msra.mxu0 %v134
    %1104 = vmatprep.subr.mxu0 %v139
    %1105 = vmatpush1.msra.mxu0 %v138
    %1106 = vmatprep.subr.mxu0 %v143
    %1107 = vmatpush1.msra.mxu0 %v142
    %1108 = vmatprep.subr.mxu0 %v147
    %1109 = vmatpush1.msra.mxu0 %v146
    %1110 = vmatprep.subr.mxu0 %v151
    %1111 = vmatpush1.msra.mxu0 %v150
    %1112 = vmatprep.subr.mxu0 %v155
    %1113 = vmatpush1.msra.mxu0 %v154
    %1114 = vmatprep.subr.mxu0 %v159
    %1115 = vmatpush1.msra.mxu0 %v158
    %1116 = vmatprep.subr.mxu0 0.0
    %1117 = vmatpush1.msra.mxu0 0.0
    %1118 = vmatprep.subr.mxu0 0.0
    %1119 = vmatpush1.msra.mxu0 0.0
    %1120 = vmatprep.subr.mxu0 0.0
    %1121 = vmatpush1.msra.mxu0 0.0
    %1122 = vmatprep.subr.mxu0 0.0
    %1123 = vmatpush1.msra.mxu0 0.0
    %1124 = vmatprep.subr.mxu0 0.0
    %1125 = vmatpush1.msra.mxu0 0.0
    %1126 = vmatprep.subr.mxu0 0.0
    %1127 = vmatpush1.msra.mxu0 0.0
    %1128 = vmatprep.subr.mxu0 0.0
    %1129 = vmatpush1.msra.mxu0 0.0
    %1130 = vmatprep.subr.mxu0 0.0
    %1131 = vmatpush1.msra.mxu0 0.0
    %1132 = vmatprep.subr.mxu0 0.0
    %1133 = vmatpush1.msra.mxu0 0.0
    %1134 = vmatprep.subr.mxu0 0.0
    %1135 = vmatpush1.msra.mxu0 0.0
    %1136 = vmatprep.subr.mxu0 0.0
    %1137 = vmatpush1.msra.mxu0 0.0
    %1138 = vmatprep.subr.mxu0 0.0
    %1139 = vmatpush1.msra.mxu0 0.0
    %1140 = vmatprep.subr.mxu0 0.0
    %1141 = vmatpush1.msra.mxu0 0.0
    %1142 = vmatprep.subr.mxu0 0.0
    %1143 = vmatpush1.msra.mxu0 0.0
    %1144 = vmatprep.subr.mxu0 0.0
    %1145 = vmatpush1.msra.mxu0 0.0
    %1146 = vmatprep.subr.mxu0 0.0
    %1147 = vmatpush1.msra.mxu0 0.0
    %1148 = vmatprep.mubr.f32.mxu0 0.0
    %1149 = vmatmul.mubr.f32.gmra.mrb[0].mxu0 %v1082
    %v1150 = vpop.f32.mrb[0].mxu0
    %v1151 = vadd.f32 0.0, %v1150
    %v1152 = vpop.f32.mrb[0].mxu0
    %v1153 = vadd.f32 0.0, %v1152
    %1154 = vdwg.mxu0
    %1155 = vmatprep.subr.mxu0 %v101
    %1156 = vmatpush1.msra.mxu0 %v100
    %1157 = vmatprep.subr.mxu0 %v105
    %1158 = vmatpush1.msra.mxu0 %v104
    %1159 = vmatprep.subr.mxu0 %v109
    %1160 = vmatpush1.msra.mxu0 %v108
    %1161 = vmatprep.subr.mxu0 %v113
    %1162 = vmatpush1.msra.mxu0 %v112
    %1163 = vmatprep.subr.mxu0 %v117
    %1164 = vmatpush1.msra.mxu0 %v116
    %1165 = vmatprep.subr.mxu0 %v121
    %1166 = vmatpush1.msra.mxu0 %v120
    %1167 = vmatprep.subr.mxu0 %v125
    %1168 = vmatpush1.msra.mxu0 %v124
    %1169 = vmatprep.subr.mxu0 %v129
    %1170 = vmatpush1.msra.mxu0 %v128
    %1171 = vmatprep.subr.mxu0 %v133
    %1172 = vmatpush1.msra.mxu0 %v132
    %1173 = vmatprep.subr.mxu0 %v137
    %1174 = vmatpush1.msra.mxu0 %v136
    %1175 = vmatprep.subr.mxu0 %v141
    %1176 = vmatpush1.msra.mxu0 %v140
    %1177 = vmatprep.subr.mxu0 %v145
    %1178 = vmatpush1.msra.mxu0 %v144
    %1179 = vmatprep.subr.mxu0 %v149
    %1180 = vmatpush1.msra.mxu0 %v148
    %1181 = vmatprep.subr.mxu0 %v153
    %1182 = vmatpush1.msra.mxu0 %v152
    %1183 = vmatprep.subr.mxu0 %v157
    %1184 = vmatpush1.msra.mxu0 %v156
    %1185 = vmatprep.subr.mxu0 %v161
    %1186 = vmatpush1.msra.mxu0 %v160
    %1187 = vmatprep.subr.mxu0 0.0
    %1188 = vmatpush1.msra.mxu0 0.0
    %1189 = vmatprep.subr.mxu0 0.0
    %1190 = vmatpush1.msra.mxu0 0.0
    %1191 = vmatprep.subr.mxu0 0.0
    %1192 = vmatpush1.msra.mxu0 0.0
    %1193 = vmatprep.subr.mxu0 0.0
    %1194 = vmatpush1.msra.mxu0 0.0
    %1195 = vmatprep.subr.mxu0 0.0
    %1196 = vmatpush1.msra.mxu0 0.0
    %1197 = vmatprep.subr.mxu0 0.0
    %1198 = vmatpush1.msra.mxu0 0.0
    %1199 = vmatprep.subr.mxu0 0.0
    %1200 = vmatpush1.msra.mxu0 0.0
    %1201 = vmatprep.subr.mxu0 0.0
    %1202 = vmatpush1.msra.mxu0 0.0
    %1203 = vmatprep.subr.mxu0 0.0
    %1204 = vmatpush1.msra.mxu0 0.0
    %1205 = vmatprep.subr.mxu0 0.0
    %1206 = vmatpush1.msra.mxu0 0.0
    %1207 = vmatprep.subr.mxu0 0.0
    %1208 = vmatpush1.msra.mxu0 0.0
    %1209 = vmatprep.subr.mxu0 0.0
    %1210 = vmatpush1.msra.mxu0 0.0
    %1211 = vmatprep.subr.mxu0 0.0
    %1212 = vmatpush1.msra.mxu0 0.0
    %1213 = vmatprep.subr.mxu0 0.0
    %1214 = vmatpush1.msra.mxu0 0.0
    %1215 = vmatprep.subr.mxu0 0.0
    %1216 = vmatpush1.msra.mxu0 0.0
    %1217 = vmatprep.subr.mxu0 0.0
    %1218 = vmatpush1.msra.mxu0 0.0
    %1219 = vmatprep.mubr.f32.mxu0 0.0
    %1220 = vmatmul.mubr.f32.gmra.mrb[0].mxu0 %v1082
    %v1221 = vpop.f32.mrb[0].mxu0
    %v1222 = vadd.f32 0.0, %v1221
    %v1223 = vpop.f32.mrb[0].mxu0
    %v1224 = vadd.f32 0.0, %v1223
    %1225 = vdwg.mxu0
    %v1230 = vrot.slane %v1151, 3
    %v1231 = vrot.slane %v1153, 3
    %v1232 = vrot.slane %v1222, 3
    %v1233 = vrot.slane %v1224, 3
    %v1238 = vadd.f32 %v94, %v1230
    %v1239 = vadd.f32 %v95, %v1231
    %v1240 = vadd.f32 %v96, %v1232
    %v1241 = vadd.f32 %v97, %v1233
    %v1242 = vxor.u32 %v1238, 2147483648
    %v1243 = vxor.u32 %v1239, 2147483648
    %v1244 = vxor.u32 %v1240, 2147483648
    %v1245 = vmul.f32 %v1242, 1.442695
    %v1246 = vpow.pop %v1245
    %v1247 = vmul.f32 %v1243, 1.442695
    %v1248 = vpow.pop %v1247
    %v1249 = vmul.f32 %v1244, 1.442695
    %v1250 = vpow.pop %v1249
    %v1251 = vadd.f32 %v1246, 1.0
    %v1252 = vadd.f32 %v1248, 1.0
    %v1253 = vadd.f32 %v1250, 1.0
    %v1254 = vrcp.pop %v1251
    %v1255 = vmul.f32 1.0, %v1254
    %v1256 = vrcp.pop %v1252
    %v1257 = vmul.f32 1.0, %v1256
    %v1258 = vrcp.pop %v1253
    %v1259 = vmul.f32 1.0, %v1258
    %v1260 = vtanh.pop %v1241
    %v1262 = vrot.slane %v1078, 7
    %v1264 = vmul.f32 %v1257, %v1262
    %v1265 = vmul.f32 %v1255, %v1260
    %v1266 = vadd.f32 %v1264, %v1265
    %v1267 = vtanh.pop %v1266
    %v1268 = vmul.f32 %v1259, %v1267
    %v1270 = vrot.slane %v1268, 5
    %1272 = vmatprep.subr.mxu0 %v99
    %1273 = vmatpush1.msra.mxu0 %v98
    %1274 = vmatprep.subr.mxu0 %v103
    %1275 = vmatpush1.msra.mxu0 %v102
    %1276 = vmatprep.subr.mxu0 %v107
    %1277 = vmatpush1.msra.mxu0 %v106
    %1278 = vmatprep.subr.mxu0 %v111
    %1279 = vmatpush1.msra.mxu0 %v110
    %1280 = vmatprep.subr.mxu0 %v115
    %1281 = vmatpush1.msra.mxu0 %v114
    %1282 = vmatprep.subr.mxu0 %v119
    %1283 = vmatpush1.msra.mxu0 %v118
    %1284 = vmatprep.subr.mxu0 %v123
    %1285 = vmatpush1.msra.mxu0 %v122
    %1286 = vmatprep.subr.mxu0 %v127
    %1287 = vmatpush1.msra.mxu0 %v126
    %1288 = vmatprep.subr.mxu0 %v131
    %1289 = vmatpush1.msra.mxu0 %v130
    %1290 = vmatprep.subr.mxu0 %v135
    %1291 = vmatpush1.msra.mxu0 %v134
    %1292 = vmatprep.subr.mxu0 %v139
    %1293 = vmatpush1.msra.mxu0 %v138
    %1294 = vmatprep.subr.mxu0 %v143
    %1295 = vmatpush1.msra.mxu0 %v142
    %1296 = vmatprep.subr.mxu0 %v147
    %1297 = vmatpush1.msra.mxu0 %v146
    %1298 = vmatprep.subr.mxu0 %v151
    %1299 = vmatpush1.msra.mxu0 %v150
    %1300 = vmatprep.subr.mxu0 %v155
    %1301 = vmatpush1.msra.mxu0 %v154
    %1302 = vmatprep.subr.mxu0 %v159
    %1303 = vmatpush1.msra.mxu0 %v158
    %1304 = vmatprep.subr.mxu0 0.0
    %1305 = vmatpush1.msra.mxu0 0.0
    %1306 = vmatprep.subr.mxu0 0.0
    %1307 = vmatpush1.msra.mxu0 0.0
    %1308 = vmatprep.subr.mxu0 0.0
    %1309 = vmatpush1.msra.mxu0 0.0
    %1310 = vmatprep.subr.mxu0 0.0
    %1311 = vmatpush1.msra.mxu0 0.0
    %1312 = vmatprep.subr.mxu0 0.0
    %1313 = vmatpush1.msra.mxu0 0.0
    %1314 = vmatprep.subr.mxu0 0.0
    %1315 = vmatpush1.msra.mxu0 0.0
    %1316 = vmatprep.subr.mxu0 0.0
    %1317 = vmatpush1.msra.mxu0 0.0
    %1318 = vmatprep.subr.mxu0 0.0
    %1319 = vmatpush1.msra.mxu0 0.0
    %1320 = vmatprep.subr.mxu0 0.0
    %1321 = vmatpush1.msra.mxu0 0.0
    %1322 = vmatprep.subr.mxu0 0.0
    %1323 = vmatpush1.msra.mxu0 0.0
    %1324 = vmatprep.subr.mxu0 0.0
    %1325 = vmatpush1.msra.mxu0 0.0
    %1326 = vmatprep.subr.mxu0 0.0
    %1327 = vmatpush1.msra.mxu0 0.0
    %1328 = vmatprep.subr.mxu0 0.0
    %1329 = vmatpush1.msra.mxu0 0.0
    %1330 = vmatprep.subr.mxu0 0.0
    %1331 = vmatpush1.msra.mxu0 0.0
    %1332 = vmatprep.subr.mxu0 0.0
    %1333 = vmatpush1.msra.mxu0 0.0
    %1334 = vmatprep.subr.mxu0 0.0
    %1335 = vmatpush1.msra.mxu0 0.0
    %1336 = vmatprep.mubr.f32.mxu0 0.0
    %1337 = vmatmul.mubr.f32.gmra.mrb[0].mxu0 %v1270
    %v1338 = vpop.f32.mrb[0].mxu0
    %v1339 = vadd.f32 0.0, %v1338
    %v1340 = vpop.f32.mrb[0].mxu0
    %v1341 = vadd.f32 0.0, %v1340
    %1342 = vdwg.mxu0
    %1343 = vmatprep.subr.mxu0 %v101
    %1344 = vmatpush1.msra.mxu0 %v100
    %1345 = vmatprep.subr.mxu0 %v105
    %1346 = vmatpush1.msra.mxu0 %v104
    %1347 = vmatprep.subr.mxu0 %v109
    %1348 = vmatpush1.msra.mxu0 %v108
    %1349 = vmatprep.subr.mxu0 %v113
    %1350 = vmatpush1.msra.mxu0 %v112
    %1351 = vmatprep.subr.mxu0 %v117
    %1352 = vmatpush1.msra.mxu0 %v116
    %1353 = vmatprep.subr.mxu0 %v121
    %1354 = vmatpush1.msra.mxu0 %v120
    %1355 = vmatprep.subr.mxu0 %v125
    %1356 = vmatpush1.msra.mxu0 %v124
    %1357 = vmatprep.subr.mxu0 %v129
    %1358 = vmatpush1.msra.mxu0 %v128
    %1359 = vmatprep.subr.mxu0 %v133
    %1360 = vmatpush1.msra.mxu0 %v132
    %1361 = vmatprep.subr.mxu0 %v137
    %1362 = vmatpush1.msra.mxu0 %v136
    %1363 = vmatprep.subr.mxu0 %v141
    %1364 = vmatpush1.msra.mxu0 %v140
    %1365 = vmatprep.subr.mxu0 %v145
    %1366 = vmatpush1.msra.mxu0 %v144
    %1367 = vmatprep.subr.mxu0 %v149
    %1368 = vmatpush1.msra.mxu0 %v148
    %1369 = vmatprep.subr.mxu0 %v153
    %1370 = vmatpush1.msra.mxu0 %v152
    %1371 = vmatprep.subr.mxu0 %v157
    %1372 = vmatpush1.msra.mxu0 %v156
    %1373 = vmatprep.subr.mxu0 %v161
    %1374 = vmatpush1.msra.mxu0 %v160
    %1375 = vmatprep.subr.mxu0 0.0
    %1376 = vmatpush1.msra.mxu0 0.0
    %1377 = vmatprep.subr.mxu0 0.0
    %1378 = vmatpush1.msra.mxu0 0.0
    %1379 = vmatprep.subr.mxu0 0.0
    %1380 = vmatpush1.msra.mxu0 0.0
    %1381 = vmatprep.subr.mxu0 0.0
    %1382 = vmatpush1.msra.mxu0 0.0
    %1383 = vmatprep.subr.mxu0 0.0
    %1384 = vmatpush1.msra.mxu0 0.0
    %1385 = vmatprep.subr.mxu0 0.0
    %1386 = vmatpush1.msra.mxu0 0.0
    %1387 = vmatprep.subr.mxu0 0.0
    %1388 = vmatpush1.msra.mxu0 0.0
    %1389 = vmatprep.subr.mxu0 0.0
    %1390 = vmatpush1.msra.mxu0 0.0
    %1391 = vmatprep.subr.mxu0 0.0
    %1392 = vmatpush1.msra.mxu0 0.0
    %1393 = vmatprep.subr.mxu0 0.0
    %1394 = vmatpush1.msra.mxu0 0.0
    %1395 = vmatprep.subr.mxu0 0.0
    %1396 = vmatpush1.msra.mxu0 0.0
    %1397 = vmatprep.subr.mxu0 0.0
    %1398 = vmatpush1.msra.mxu0 0.0
    %1399 = vmatprep.subr.mxu0 0.0
    %1400 = vmatpush1.msra.mxu0 0.0
    %1401 = vmatprep.subr.mxu0 0.0
    %1402 = vmatpush1.msra.mxu0 0.0
    %1403 = vmatprep.subr.mxu0 0.0
    %1404 = vmatpush1.msra.mxu0 0.0
    %1405 = vmatprep.subr.mxu0 0.0
    %1406 = vmatpush1.msra.mxu0 0.0
    %1407 = vmatprep.mubr.f32.mxu0 0.0
    %1408 = vmatmul.mubr.f32.gmra.mrb[0].mxu0 %v1270
    %v1409 = vpop.f32.mrb[0].mxu0
    %v1410 = vadd.f32 0.0, %v1409
    %v1411 = vpop.f32.mrb[0].mxu0
    %v1412 = vadd.f32 0.0, %v1411
    %1413 = vdwg.mxu0
    %v1418 = vrot.slane %v1339, 2
    %v1419 = vrot.slane %v1341, 2
    %v1420 = vrot.slane %v1410, 2
    %v1421 = vrot.slane %v1412, 2
    %v1426 = vadd.f32 %v94, %v1418
    %v1427 = vadd.f32 %v95, %v1419
    %v1428 = vadd.f32 %v96, %v1420
    %v1429 = vadd.f32 %v97, %v1421
    %v1430 = vxor.u32 %v1426, 2147483648
    %v1431 = vxor.u32 %v1427, 2147483648
    %v1432 = vxor.u32 %v1428, 2147483648
    %v1433 = vmul.f32 %v1430, 1.442695
    %v1434 = vpow.pop %v1433
    %v1435 = vmul.f32 %v1431, 1.442695
    %v1436 = vpow.pop %v1435
    %v1437 = vmul.f32 %v1432, 1.442695
    %v1438 = vpow.pop %v1437
    %v1439 = vadd.f32 %v1434, 1.0
    %v1440 = vadd.f32 %v1436, 1.0
    %v1441 = vadd.f32 %v1438, 1.0
    %v1442 = vrcp.pop %v1439
    %v1443 = vmul.f32 1.0, %v1442
    %v1444 = vrcp.pop %v1440
    %v1445 = vmul.f32 1.0, %v1444
    %v1446 = vrcp.pop %v1441
    %v1447 = vmul.f32 1.0, %v1446
    %v1448 = vtanh.pop %v1429
    %v1450 = vrot.slane %v1266, 7
    %v1452 = vmul.f32 %v1445, %v1450
    %v1453 = vmul.f32 %v1443, %v1448
    %v1454 = vadd.f32 %v1452, %v1453
    %v1455 = vtanh.pop %v1454
    %v1456 = vmul.f32 %v1447, %v1455
    %v1458 = vrot.slane %v1456, 6
    %1460 = vmatprep.subr.mxu0 %v99
    %1461 = vmatpush1.msra.mxu0 %v98
    %1462 = vmatprep.subr.mxu0 %v103
    %1463 = vmatpush1.msra.mxu0 %v102
    %1464 = vmatprep.subr.mxu0 %v107
    %1465 = vmatpush1.msra.mxu0 %v106
    %1466 = vmatprep.subr.mxu0 %v111
    %1467 = vmatpush1.msra.mxu0 %v110
    %1468 = vmatprep.subr.mxu0 %v115
    %1469 = vmatpush1.msra.mxu0 %v114
    %1470 = vmatprep.subr.mxu0 %v119
    %1471 = vmatpush1.msra.mxu0 %v118
    %1472 = vmatprep.subr.mxu0 %v123
    %1473 = vmatpush1.msra.mxu0 %v122
    %1474 = vmatprep.subr.mxu0 %v127
    %1475 = vmatpush1.msra.mxu0 %v126
    %1476 = vmatprep.subr.mxu0 %v131
    %1477 = vmatpush1.msra.mxu0 %v130
    %1478 = vmatprep.subr.mxu0 %v135
    %1479 = vmatpush1.msra.mxu0 %v134
    %1480 = vmatprep.subr.mxu0 %v139
    %1481 = vmatpush1.msra.mxu0 %v138
    %1482 = vmatprep.subr.mxu0 %v143
    %1483 = vmatpush1.msra.mxu0 %v142
    %1484 = vmatprep.subr.mxu0 %v147
    %1485 = vmatpush1.msra.mxu0 %v146
    %1486 = vmatprep.subr.mxu0 %v151
    %1487 = vmatpush1.msra.mxu0 %v150
    %1488 = vmatprep.subr.mxu0 %v155
    %1489 = vmatpush1.msra.mxu0 %v154
    %1490 = vmatprep.subr.mxu0 %v159
    %1491 = vmatpush1.msra.mxu0 %v158
    %1492 = vmatprep.subr.mxu0 0.0
    %1493 = vmatpush1.msra.mxu0 0.0
    %1494 = vmatprep.subr.mxu0 0.0
    %1495 = vmatpush1.msra.mxu0 0.0
    %1496 = vmatprep.subr.mxu0 0.0
    %1497 = vmatpush1.msra.mxu0 0.0
    %1498 = vmatprep.subr.mxu0 0.0
    %1499 = vmatpush1.msra.mxu0 0.0
    %1500 = vmatprep.subr.mxu0 0.0
    %1501 = vmatpush1.msra.mxu0 0.0
    %1502 = vmatprep.subr.mxu0 0.0
    %1503 = vmatpush1.msra.mxu0 0.0
    %1504 = vmatprep.subr.mxu0 0.0
    %1505 = vmatpush1.msra.mxu0 0.0
    %1506 = vmatprep.subr.mxu0 0.0
    %1507 = vmatpush1.msra.mxu0 0.0
    %1508 = vmatprep.subr.mxu0 0.0
    %1509 = vmatpush1.msra.mxu0 0.0
    %1510 = vmatprep.subr.mxu0 0.0
    %1511 = vmatpush1.msra.mxu0 0.0
    %1512 = vmatprep.subr.mxu0 0.0
    %1513 = vmatpush1.msra.mxu0 0.0
    %1514 = vmatprep.subr.mxu0 0.0
    %1515 = vmatpush1.msra.mxu0 0.0
    %1516 = vmatprep.subr.mxu0 0.0
    %1517 = vmatpush1.msra.mxu0 0.0
    %1518 = vmatprep.subr.mxu0 0.0
    %1519 = vmatpush1.msra.mxu0 0.0
    %1520 = vmatprep.subr.mxu0 0.0
    %1521 = vmatpush1.msra.mxu0 0.0
    %1522 = vmatprep.subr.mxu0 0.0
    %1523 = vmatpush1.msra.mxu0 0.0
    %1524 = vmatprep.mubr.f32.mxu0 0.0
    %1525 = vmatmul.mubr.f32.gmra.mrb[0].mxu0 %v1458
    %v1526 = vpop.f32.mrb[0].mxu0
    %v1527 = vadd.f32 0.0, %v1526
    %v1528 = vpop.f32.mrb[0].mxu0
    %v1529 = vadd.f32 0.0, %v1528
    %1530 = vdwg.mxu0
    %1531 = vmatprep.subr.mxu0 %v101
    %1532 = vmatpush1.msra.mxu0 %v100
    %1533 = vmatprep.subr.mxu0 %v105
    %1534 = vmatpush1.msra.mxu0 %v104
    %1535 = vmatprep.subr.mxu0 %v109
    %1536 = vmatpush1.msra.mxu0 %v108
    %1537 = vmatprep.subr.mxu0 %v113
    %1538 = vmatpush1.msra.mxu0 %v112
    %1539 = vmatprep.subr.mxu0 %v117
    %1540 = vmatpush1.msra.mxu0 %v116
    %1541 = vmatprep.subr.mxu0 %v121
    %1542 = vmatpush1.msra.mxu0 %v120
    %1543 = vmatprep.subr.mxu0 %v125
    %1544 = vmatpush1.msra.mxu0 %v124
    %1545 = vmatprep.subr.mxu0 %v129
    %1546 = vmatpush1.msra.mxu0 %v128
    %1547 = vmatprep.subr.mxu0 %v133
    %1548 = vmatpush1.msra.mxu0 %v132
    %1549 = vmatprep.subr.mxu0 %v137
    %1550 = vmatpush1.msra.mxu0 %v136
    %1551 = vmatprep.subr.mxu0 %v141
    %1552 = vmatpush1.msra.mxu0 %v140
    %1553 = vmatprep.subr.mxu0 %v145
    %1554 = vmatpush1.msra.mxu0 %v144
    %1555 = vmatprep.subr.mxu0 %v149
    %1556 = vmatpush1.msra.mxu0 %v148
    %1557 = vmatprep.subr.mxu0 %v153
    %1558 = vmatpush1.msra.mxu0 %v152
    %1559 = vmatprep.subr.mxu0 %v157
    %1560 = vmatpush1.msra.mxu0 %v156
    %1561 = vmatprep.subr.mxu0 %v161
    %1562 = vmatpush1.msra.mxu0 %v160
    %1563 = vmatprep.subr.mxu0 0.0
    %1564 = vmatpush1.msra.mxu0 0.0
    %1565 = vmatprep.subr.mxu0 0.0
    %1566 = vmatpush1.msra.mxu0 0.0
    %1567 = vmatprep.subr.mxu0 0.0
    %1568 = vmatpush1.msra.mxu0 0.0
    %1569 = vmatprep.subr.mxu0 0.0
    %1570 = vmatpush1.msra.mxu0 0.0
    %1571 = vmatprep.subr.mxu0 0.0
    %1572 = vmatpush1.msra.mxu0 0.0
    %1573 = vmatprep.subr.mxu0 0.0
    %1574 = vmatpush1.msra.mxu0 0.0
    %1575 = vmatprep.subr.mxu0 0.0
    %1576 = vmatpush1.msra.mxu0 0.0
    %1577 = vmatprep.subr.mxu0 0.0
    %1578 = vmatpush1.msra.mxu0 0.0
    %1579 = vmatprep.subr.mxu0 0.0
    %1580 = vmatpush1.msra.mxu0 0.0
    %1581 = vmatprep.subr.mxu0 0.0
    %1582 = vmatpush1.msra.mxu0 0.0
    %1583 = vmatprep.subr.mxu0 0.0
    %1584 = vmatpush1.msra.mxu0 0.0
    %1585 = vmatprep.subr.mxu0 0.0
    %1586 = vmatpush1.msra.mxu0 0.0
    %1587 = vmatprep.subr.mxu0 0.0
    %1588 = vmatpush1.msra.mxu0 0.0
    %1589 = vmatprep.subr.mxu0 0.0
    %1590 = vmatpush1.msra.mxu0 0.0
    %1591 = vmatprep.subr.mxu0 0.0
    %1592 = vmatpush1.msra.mxu0 0.0
    %1593 = vmatprep.subr.mxu0 0.0
    %1594 = vmatpush1.msra.mxu0 0.0
    %1595 = vmatprep.mubr.f32.mxu0 0.0
    %1596 = vmatmul.mubr.f32.gmra.mrb[0].mxu0 %v1458
    %v1597 = vpop.f32.mrb[0].mxu0
    %v1598 = vadd.f32 0.0, %v1597
    %v1599 = vpop.f32.mrb[0].mxu0
    %v1600 = vadd.f32 0.0, %v1599
    %1601 = vdwg.mxu0
    %v1606 = vrot.slane %v1527, 1
    %v1607 = vrot.slane %v1529, 1
    %v1608 = vrot.slane %v1598, 1
    %v1609 = vrot.slane %v1600, 1
    %v1614 = vadd.f32 %v94, %v1606
    %v1615 = vadd.f32 %v95, %v1607
    %v1616 = vadd.f32 %v96, %v1608
    %v1617 = vadd.f32 %v97, %v1609
    %v1618 = vxor.u32 %v1614, 2147483648
    %v1619 = vxor.u32 %v1615, 2147483648
    %v1620 = vxor.u32 %v1616, 2147483648
    %v1621 = vmul.f32 %v1618, 1.442695
    %v1622 = vpow.pop %v1621
    %v1623 = vmul.f32 %v1619, 1.442695
    %v1624 = vpow.pop %v1623
    %v1625 = vmul.f32 %v1620, 1.442695
    %v1626 = vpow.pop %v1625
    %v1627 = vadd.f32 %v1622, 1.0
    %v1628 = vadd.f32 %v1624, 1.0
    %v1629 = vadd.f32 %v1626, 1.0
    %v1630 = vrcp.pop %v1627
    %v1631 = vmul.f32 1.0, %v1630
    %v1632 = vrcp.pop %v1628
    %v1633 = vmul.f32 1.0, %v1632
    %v1634 = vrcp.pop %v1629
    %v1635 = vmul.f32 1.0, %v1634
    %v1636 = vtanh.pop %v1617
    %v1638 = vrot.slane %v1454, 7
    %v1640 = vmul.f32 %v1633, %v1638
    %v1641 = vmul.f32 %v1631, %v1636
    %v1642 = vadd.f32 %v1640, %v1641
    %v1643 = vtanh.pop %v1642
    %v1644 = vmul.f32 %v1635, %v1643
    %v1645 = vld [vmem:[%s4] sm:$0x1]
    %v1647 = vcombine.high %v1644, %v1644
    %v1649 = vunpack.c.l.s4 1966171168
    %v1650 = vunpack.c.0.s8 %v1649
    %v1651 = vlaneseq
    %v1652 = vshrl.u32 %v1651, 7
    %v1653 = vsub.s32 %v1650, %v1652
    %v1654 = vrot.slane %v1647, %v1653
    %v1655 = vcombine.high %v1654, %v1654
    %v1657 = vunpack.c.l.s4 1966171168
    %v1658 = vunpack.c.0.s8 %v1657
    %v1659 = vlaneseq
    %v1660 = vshrl.u32 %v1659, 7
    %v1661 = vsub.s32 %v1658, %v1660
    %v1662 = vrot.slane %v1655, %v1661
    %v1663 = vcombine.high %v1662, %v1662
    %v1665 = vmul.f32 %v1645, %v1663
    %vm1666 = vcmask 1040384
    %v1667 = vsel %vm1666, %v1665, 0.0
    %1668 = vadd.xlane.f32.xlu0 %v1667
    %v1669 = vpop.xlane.xlu0 %1668
    %v1670 = vld [vmem:[#allocation2] sm:$0x1]
    %v1671 = vadd.f32 %v1669, %v1670
    %vm1672 = vcmask 0
    %1673 = vst.msk [vmem:[#allocation6] sm:$0x1] %vm1672, %v1671
    // Predicated region
    $region30: #{lstm_forward_packed.1} parent=1 // pred_check
      _
    $region31: #{lstm_forward_packed.1} parent=1 // pred_check_branch
      %1675 = sbr.rel (0) target = $region33
    $region32: #{lstm_forward_packed.1} parent=1 // pred_region
      %s1677 = ssub.s32 16, 16
      %1678 = vsyncadd [#allocation5], %s1677
      %s1680 = sshll.u32 [#allocation6], 4
      %s1681 = int_to_ptr.vmem [resolvable:$true] %s1680
      %1683 = dma.vmem_to_hbm [thread:$0]  %s1681, 16, %s6, [#allocation5]
    $region33: #{lstm_forward_packed.1} parent=1 // pred_fallthru
      _
    // Predicated region
    $region34: #{lstm_forward_packed.1} parent=1 // pred_check
      _
    $region35: #{lstm_forward_packed.1} parent=1 // pred_check_branch
      %1685 = sbr.rel (0) target = $region37
    $region36: #{lstm_forward_packed.1} parent=1 // pred_region
      %1686 = dma.done [#allocation5], 16
    $region37: #{lstm_forward_packed.1} parent=1 // pred_fallthru
      _
    %1687 = vsyncpa [#allocation4], 1
    %1688 = vsyncpa [#allocation5], 1

</llo_original>
